<compile_context>
chip_gen: v7x
topology: tpu7x:2x2x1
jax: 0.10.0
libtpu: 0.0.40
codegen_flags: <defaults>
</compile_context>

<pallas_src>
import math
import functools

import jax
import jax.numpy as jnp
from jax import lax
from jax.experimental import pallas as pl
from jax.experimental.pallas import tpu as pltpu


def _round_up(n, m):
    return ((n + m - 1) // m) * m


def _rnn_kernel(x_ref, wih_hbm, whh_hbm, bias_hbm, out_ref,
                wih_vmem, whh_vmem, bias_vmem, dma_sem, hx_sc, adapt_sc,
                *, adaptation_rate, one_minus_recovery, t_blk, b_tile,
                nonlinearity):
    first = pl.program_id(1) == 0   # first time-block of this batch tile

    @pl.when(first)
    def _start_weight_loads():
        # One-time (per batch tile / core) weight fetch into resident VMEM
        # scratch; zero-init of the recurrent carries overlaps the DMAs.
        pltpu.make_async_copy(wih_hbm, wih_vmem, dma_sem.at[0]).start()
        pltpu.make_async_copy(whh_hbm, whh_vmem, dma_sem.at[1]).start()
        pltpu.make_async_copy(bias_hbm, bias_vmem, dma_sem.at[2]).start()
        hx_sc[...] = jnp.zeros_like(hx_sc)
        adapt_sc[...] = jnp.zeros_like(adapt_sc)
        pltpu.make_async_copy(wih_hbm, wih_vmem, dma_sem.at[0]).wait()
        pltpu.make_async_copy(bias_hbm, bias_vmem, dma_sem.at[2]).wait()

    # ---- Phase 1 (hoisted out of the recurrence): input projection for the
    # whole time block as ONE tall MXU matmul, staged into the out block
    # (VMEM) instead of being held live in vregs across the serial loop.
    xp = jnp.dot(x_ref[...], wih_vmem[...], preferred_element_type=jnp.float32)
    out_ref[...] = xp + bias_vmem[...]

    @pl.when(first)
    def _wait_whh():
        # W_hh is only needed by the serial loop; its DMA hides behind phase 1.
        pltpu.make_async_copy(whh_hbm, whh_vmem, dma_sem.at[1]).wait()

    w_hh_T = whh_vmem[...]          # (H_pad, H_pad), pre-transposed
    mm_dtype = w_hh_T.dtype

    # ---- Phase 2: sequential adaptive recurrence. Only h @ W_hh^T remains
    # inside the serial loop; per-step input projection is read back from the
    # VMEM-staged out block and overwritten in place with h.
    def step(s, carry):
        h, adapt = carry
        row = pl.multiple_of(s * b_tile, b_tile)
        xp_s = out_ref[pl.ds(row, b_tile), :]                       # f32
        pre = xp_s + jnp.dot(h.astype(mm_dtype), w_hh_T,
                             preferred_element_type=jnp.float32)
        adapted = jnp.maximum(pre - adapt, 0.0)
        adapt = (adapt + adaptation_rate * adapted) * one_minus_recovery
        if nonlinearity == 'tanh':
            h = jnp.tanh(adapted)
        else:                        # 'relu': relu(adapted) == adapted (>= 0)
            h = adapted
        out_ref[pl.ds(row, b_tile), :] = h
        return h, adapt

    h, adapt = lax.fori_loop(0, t_blk, step,
                             (hx_sc[...], adapt_sc[...]),
                             unroll=min(t_blk, 8))
    hx_sc[...] = h
    adapt_sc[...] = adapt


def simple_rnn_forward(x, w_ih, w_hh, b_ih, b_hh, *,
                       adaptation_rate=0.2, recovery_rate=0.1,
                       nonlinearity='relu',
                       matmul_dtype=jnp.bfloat16,
                       max_t_block=128,
                       num_batch_tiles=None):
    """x: (seq_len, batch, input_size). Returns (output, h_last) in float32."""
    if nonlinearity not in ('relu', 'tanh'):
        raise ValueError("Unknown nonlinearity. Supported: 'tanh', 'relu'")

    seq_len, batch, input_size = x.shape
    hidden = w_ih.shape[0]
    mm_bytes = jnp.dtype(matmul_dtype).itemsize

    # ---- Padded / tiled shapes: lane-dense hidden, sublane-dense batch.
    h_pad = _round_up(hidden, 128)
    b_pad0 = _round_up(batch, 8)
    if num_batch_tiles is None:
        # Two batch tiles reach v7x's 2nd TensorCore; harmless on v5e/v6e.
        num_batch_tiles = 2 if b_pad0 >= 16 else 1
    b_tile = _round_up(-(-b_pad0 // num_batch_tiles), 8)
    b_pad = b_tile * num_batch_tiles

    # ---- Pick t_blk from a VMEM budget (resident weights + carries +
    # double-buffered x/out blocks), then pad seq_len to a multiple of it.
    resident = ((input_size * h_pad + h_pad * h_pad) * mm_bytes    # weights
                + h_pad * 4                                        # bias
                + 2 * b_tile * h_pad * 4)                          # h / adapt
    per_t = 2 * b_tile * input_size * mm_bytes + 2 * b_tile * h_pad * 4
    budget = 40 << 20
    t_max = max(1, (budget - resident) // per_t) if budget > resident else 1
    t_blk = int(max(1, min(seq_len, t_max, max_t_block)))
    num_blocks = -(-seq_len // t_blk)
    seq_pad = num_blocks * t_blk
    tb_rows = t_blk * b_tile

    x_block_bytes = tb_rows * input_size * mm_bytes
    out_block_bytes = tb_rows * h_pad * 4
    need = resident + 2 * (x_block_bytes + out_block_bytes)
    vmem_limit = int(min(max(need * 3 // 2 + (4 << 20), 16 << 20), 60 << 20))

    # ---- One-time layout prep in JAX: pre-transposed, hidden-padded weights,
    # fused bias, and x re-laid-out so each grid block is an already-merged
    # (t_blk*b_tile, input) slab (no in-kernel reshape / relayout).
    f32 = jnp.float32
    w_ih_t = (jnp.zeros((input_size, h_pad), f32)
              .at[:, :hidden].set(jnp.asarray(w_ih, f32).T)
              .astype(matmul_dtype))
    w_hh_t = (jnp.zeros((h_pad, h_pad), f32)
              .at[:hidden, :hidden].set(jnp.asarray(w_hh, f32).T)
              .astype(matmul_dtype))
    bias = (jnp.zeros((1, h_pad), f32)
            .at[0, :hidden].set(jnp.asarray(b_ih, f32) + jnp.asarray(b_hh, f32)))

    x_pad = (jnp.zeros((seq_pad, b_pad, input_size), f32)
             .at[:seq_len, :batch, :].set(jnp.asarray(x, f32)))
    x_blocks = (x_pad.reshape(num_blocks, t_blk, num_batch_tiles, b_tile, input_size)
                .transpose(2, 0, 1, 3, 4)
                .reshape(num_batch_tiles, num_blocks, tb_rows, input_size)
                .astype(matmul_dtype))

    kernel = functools.partial(
        _rnn_kernel,
        adaptation_rate=float(adaptation_rate),
        one_minus_recovery=float(1.0 - recovery_rate),
        t_blk=t_blk, b_tile=b_tile, nonlinearity=nonlinearity)

    out_blocks = pl.pallas_call(
        kernel,
        out_shape=jax.ShapeDtypeStruct(
            (num_batch_tiles, num_blocks, tb_rows, h_pad), jnp.float32),
        grid_spec=pltpu.PrefetchScalarGridSpec(
            num_scalar_prefetch=0,
            grid=(num_batch_tiles, num_blocks),
            in_specs=[
                pl.BlockSpec((None, None, tb_rows, input_size),
                             lambda bt, tb: (bt, tb, 0, 0)),
                pl.BlockSpec(memory_space=pl.ANY),   # W_ih^T  (fetched once)
                pl.BlockSpec(memory_space=pl.ANY),   # W_hh^T  (fetched once)
                pl.BlockSpec(memory_space=pl.ANY),   # fused bias
            ],
            out_specs=pl.BlockSpec((None, None, tb_rows, h_pad),
                                   lambda bt, tb: (bt, tb, 0, 0)),
            scratch_shapes=[
                pltpu.VMEM((input_size, h_pad), matmul_dtype),  # W_ih^T resident
                pltpu.VMEM((h_pad, h_pad), matmul_dtype),       # W_hh^T resident
                pltpu.VMEM((1, h_pad), jnp.float32),            # bias resident
                pltpu.SemaphoreType.DMA((3,)),                  # weight-load sems
                pltpu.VMEM((b_tile, h_pad), jnp.float32),       # h carry
                pltpu.VMEM((b_tile, h_pad), jnp.float32),       # adaptation carry
            ],
        ),
        compiler_params=pltpu.CompilerParams(
            dimension_semantics=("parallel", "arbitrary"),
            vmem_limit_bytes=vmem_limit,
        ),
    )(x_blocks, w_ih_t, w_hh_t, bias)

    out_full = (out_blocks
                .reshape(num_batch_tiles, num_blocks, t_blk, b_tile, h_pad)
                .transpose(1, 2, 0, 3, 4)
                .reshape(seq_pad, b_pad, h_pad))
    out = out_full[:seq_len, :batch, :hidden]
    h_last = out[seq_len - 1]        # h after the real last timestep
    return out, h_last


def _reference(x, w_ih, w_hh, b_ih, b_hh, adaptation_rate=0.2,
               recovery_rate=0.1, nonlinearity='relu'):
    """Pure-JAX reference mirroring the PyTorch loop."""
    _, batch, _ = x.shape
    hidden = w_ih.shape[0]
    hx = jnp.zeros((batch, hidden), jnp.float32)
    adaptation = jnp.zeros_like(hx)

    def step(carry, x_t):
        hx, adaptation = carry
        pre = x_t @ w_ih.T + b_ih + hx @ w_hh.T + b_hh
        adapted = jnp.maximum(jnp.zeros_like(pre), pre - adaptation)
        adaptation = adaptation + adaptation_rate * adapted
        adaptation = adaptation - recovery_rate * adaptation
        hx = jnp.tanh(adapted) if nonlinearity == 'tanh' else jnp.maximum(adapted, 0.0)
        return (hx, adaptation), hx

    (hx, _), out = jax.lax.scan(step, (hx, adaptation), x)
    return out, hx


if __name__ == "__main__":
    # Small shapes consistent with the module. batch=10 -> two 8-row batch
    # tiles (exercises the parallel batch axis); max_t_block=5 with seq_len=16
    # exercises seq padding + cross-grid-step h/adaptation carries.
    seq_len, batch, input_size, hidden = 16, 10, 16, 32

    key = jax.random.PRNGKey(0)
    kx, k1, k2, k3, k4 = jax.random.split(key, 5)
    stdv = 1.0 / math.sqrt(hidden)
    x = jax.random.normal(kx, (seq_len, batch, input_size), jnp.float32)
    w_ih = jax.random.uniform(k1, (hidden, input_size), jnp.float32, -stdv, stdv)
    w_hh = jax.random.uniform(k2, (hidden, hidden), jnp.float32, -stdv, stdv)
    b_ih = jax.random.uniform(k3, (hidden,), jnp.float32, -stdv, stdv)
    b_hh = jax.random.uniform(k4, (hidden,), jnp.float32, -stdv, stdv)

    # 1) Exact (f32 matmul) path vs. pure-JAX reference, relu.
    out, h_last = simple_rnn_forward(x, w_ih, w_hh, b_ih, b_hh,
                                     matmul_dtype=jnp.float32, max_t_block=5)
    jax.block_until_ready((out, h_last))
    ref_out, ref_h = _reference(x, w_ih, w_hh, b_ih, b_hh)
    assert out.shape == (seq_len, batch, hidden)
    assert h_last.shape == (batch, hidden)
    assert jnp.allclose(out, ref_out, atol=2e-4, rtol=2e-4)
    assert jnp.allclose(h_last, ref_h, atol=2e-4, rtol=2e-4)

    # 2) tanh path (f32 matmuls).
    out_t, h_t = simple_rnn_forward(x, w_ih, w_hh, b_ih, b_hh,
                                    nonlinearity='tanh',
                                    matmul_dtype=jnp.float32)
    jax.block_until_ready((out_t, h_t))
    ref_out_t, ref_h_t = _reference(x, w_ih, w_hh, b_ih, b_hh, nonlinearity='tanh')
    assert jnp.allclose(out_t, ref_out_t, atol=2e-3, rtol=2e-3)
    assert jnp.allclose(h_t, ref_h_t, atol=2e-3, rtol=2e-3)

    # 3) bf16 fast path (default): looser tolerance (bf16 matmul operands,
    #    f32 accumulation and carries).
    out_bf, h_bf = simple_rnn_forward(x, w_ih, w_hh, b_ih, b_hh)
    jax.block_until_ready((out_bf, h_bf))
    assert jnp.allclose(out_bf, ref_out, atol=1e-1, rtol=1e-1)
    assert jnp.allclose(h_bf, ref_h, atol=1e-1, rtol=1e-1)

    print("KERNEL_OK")
</pallas_src>

<mosaic_0001>
module attributes {stable_mosaic.version = 11 : i64} {
  func.func @_rnn_kernel(%arg0: i32, %arg1: i32, %arg2: memref<1x1x40x16xf32, #tpu.memory_space<vmem>>, %arg3: memref<16x128xf32, #tpu.memory_space<any>>, %arg4: memref<128x128xf32, #tpu.memory_space<any>>, %arg5: memref<1x128xf32, #tpu.memory_space<any>>, %arg6: memref<1x1x40x128xf32, #tpu.memory_space<vmem>>, %arg7: memref<16x128xf32, #tpu.memory_space<vmem>>, %arg8: memref<128x128xf32, #tpu.memory_space<vmem>>, %arg9: memref<1x128xf32, #tpu.memory_space<vmem>>, %arg10: memref<3x!tpu.dma_semaphore, #tpu.memory_space<semaphore_mem>>, %arg11: memref<8x128xf32, #tpu.memory_space<vmem>>, %arg12: memref<8x128xf32, #tpu.memory_space<vmem>>) attributes {dimension_semantics = [#tpu.dimension_semantics<parallel>, #tpu.dimension_semantics<arbitrary>], iteration_bounds = array<i64: 2, 4>, scalar_prefetch = 0 : i64, scratch_operands = 6 : i64, tpu.core_type = #tpu.core_type<tc>, window_params = [{transform_indices = @transform_0, window_bounds = array<i64: 1, 1, 40, 16>}, {}, {}, {}, {transform_indices = @transform_4, window_bounds = array<i64: 1, 1, 40, 128>}]} {
    %c0_i32 = arith.constant 0 : i32
    %0 = arith.cmpi eq, %arg1, %c0_i32 : i32
    %1 = arith.extui %0 : i1 to i32
    %c0_i32_0 = arith.constant 0 : i32
    %2 = arith.cmpi ne, %1, %c0_i32_0 : i32
    scf.if %2 {
      %c0_i32_78 = arith.constant 0 : i32
      %115 = tpu.memref_slice %arg10[%c0_i32_78] : memref<3x!tpu.dma_semaphore, #tpu.memory_space<semaphore_mem>> -> memref<1x!tpu.dma_semaphore, #tpu.memory_space<semaphore_mem>>
      %116 = tpu.memref_squeeze %115 : memref<1x!tpu.dma_semaphore, #tpu.memory_space<semaphore_mem>> -> memref<!tpu.dma_semaphore, #tpu.memory_space<semaphore_mem>>
      tpu.enqueue_dma source(%arg3 : memref<16x128xf32, #tpu.memory_space<any>>) target(%arg7 : memref<16x128xf32, #tpu.memory_space<vmem>>) target_semaphore(%116 : memref<!tpu.dma_semaphore, #tpu.memory_space<semaphore_mem>>)
      %c1_i32_79 = arith.constant 1 : i32
      %117 = tpu.memref_slice %arg10[%c1_i32_79] : memref<3x!tpu.dma_semaphore, #tpu.memory_space<semaphore_mem>> -> memref<1x!tpu.dma_semaphore, #tpu.memory_space<semaphore_mem>>
      %118 = tpu.memref_squeeze %117 : memref<1x!tpu.dma_semaphore, #tpu.memory_space<semaphore_mem>> -> memref<!tpu.dma_semaphore, #tpu.memory_space<semaphore_mem>>
      tpu.enqueue_dma source(%arg4 : memref<128x128xf32, #tpu.memory_space<any>>) target(%arg8 : memref<128x128xf32, #tpu.memory_space<vmem>>) target_semaphore(%118 : memref<!tpu.dma_semaphore, #tpu.memory_space<semaphore_mem>>)
      %c2_i32_80 = arith.constant 2 : i32
      %119 = tpu.memref_slice %arg10[%c2_i32_80] : memref<3x!tpu.dma_semaphore, #tpu.memory_space<semaphore_mem>> -> memref<1x!tpu.dma_semaphore, #tpu.memory_space<semaphore_mem>>
      %120 = tpu.memref_squeeze %119 : memref<1x!tpu.dma_semaphore, #tpu.memory_space<semaphore_mem>> -> memref<!tpu.dma_semaphore, #tpu.memory_space<semaphore_mem>>
      tpu.enqueue_dma source(%arg5 : memref<1x128xf32, #tpu.memory_space<any>>) target(%arg9 : memref<1x128xf32, #tpu.memory_space<vmem>>) target_semaphore(%120 : memref<!tpu.dma_semaphore, #tpu.memory_space<semaphore_mem>>)
      %cst_81 = arith.constant 0.000000e+00 : f32
      %121 = vector.broadcast %cst_81 : f32 to vector<8x128xf32>
      %c0_82 = arith.constant 0 : index
      %c0_83 = arith.constant 0 : index
      %122 = vector.load %arg11[%c0_82, %c0_83] : memref<8x128xf32, #tpu.memory_space<vmem>>, vector<8x128xf32>
      tpu.vector_store %arg11[%c0_82, %c0_83], %121 {strides = array<i32>} : memref<8x128xf32, #tpu.memory_space<vmem>>, vector<8x128xf32>,
      %cst_84 = arith.constant 0.000000e+00 : f32
      %123 = vector.broadcast %cst_84 : f32 to vector<8x128xf32>
      %c0_85 = arith.constant 0 : index
      %c0_86 = arith.constant 0 : index
      %124 = vector.load %arg12[%c0_85, %c0_86] : memref<8x128xf32, #tpu.memory_space<vmem>>, vector<8x128xf32>
      tpu.vector_store %arg12[%c0_85, %c0_86], %123 {strides = array<i32>} : memref<8x128xf32, #tpu.memory_space<vmem>>, vector<8x128xf32>,
      %c0_i32_87 = arith.constant 0 : i32
      %125 = tpu.memref_slice %arg10[%c0_i32_87] : memref<3x!tpu.dma_semaphore, #tpu.memory_space<semaphore_mem>> -> memref<1x!tpu.dma_semaphore, #tpu.memory_space<semaphore_mem>>
      %126 = tpu.memref_squeeze %125 : memref<1x!tpu.dma_semaphore, #tpu.memory_space<semaphore_mem>> -> memref<!tpu.dma_semaphore, #tpu.memory_space<semaphore_mem>>
      tpu.wait_dma2 semaphore(%126 : memref<!tpu.dma_semaphore, #tpu.memory_space<semaphore_mem>>) src(%arg3 : memref<16x128xf32, #tpu.memory_space<any>>) dst(%arg7 : memref<16x128xf32, #tpu.memory_space<vmem>>)
      %c2_i32_88 = arith.constant 2 : i32
      %127 = tpu.memref_slice %arg10[%c2_i32_88] : memref<3x!tpu.dma_semaphore, #tpu.memory_space<semaphore_mem>> -> memref<1x!tpu.dma_semaphore, #tpu.memory_space<semaphore_mem>>
      %128 = tpu.memref_squeeze %127 : memref<1x!tpu.dma_semaphore, #tpu.memory_space<semaphore_mem>> -> memref<!tpu.dma_semaphore, #tpu.memory_space<semaphore_mem>>
      tpu.wait_dma2 semaphore(%128 : memref<!tpu.dma_semaphore, #tpu.memory_space<semaphore_mem>>) src(%arg5 : memref<1x128xf32, #tpu.memory_space<any>>) dst(%arg9 : memref<1x128xf32, #tpu.memory_space<vmem>>)
    } else {
    }
    %c0 = arith.constant 0 : index
    %c0_1 = arith.constant 0 : index
    %c0_2 = arith.constant 0 : index
    %c0_3 = arith.constant 0 : index
    %3 = vector.load %arg2[%c0, %c0_1, %c0_2, %c0_3] : memref<1x1x40x16xf32, #tpu.memory_space<vmem>>, vector<1x1x40x16xf32>
    %4 = vector.shape_cast %3 : vector<1x1x40x16xf32> to vector<40x16xf32>
    %c0_4 = arith.constant 0 : index
    %c0_5 = arith.constant 0 : index
    %5 = vector.load %arg7[%c0_4, %c0_5] : memref<16x128xf32, #tpu.memory_space<vmem>>, vector<16x128xf32>
    %cst = arith.constant dense<0.000000e+00> : vector<40x128xf32>
    %6 = tpu.matmul %4, %5, %cst {dimension_numbers = #tpu.dot_dimension_numbers<[1], [0], [0], [1], [0, 0, 1, 1], [], []>} : vector<40x16xf32>, vector<16x128xf32>, vector<40x128xf32> -> vector<40x128xf32>
    %c0_6 = arith.constant 0 : index
    %c0_7 = arith.constant 0 : index
    %7 = vector.load %arg9[%c0_6, %c0_7] : memref<1x128xf32, #tpu.memory_space<vmem>>, vector<1x128xf32>
    %8 = vector.broadcast %7 : vector<1x128xf32> to vector<40x128xf32>
    %9 = arith.addf %6, %8 : vector<40x128xf32>
    %c0_8 = arith.constant 0 : index
    %c0_9 = arith.constant 0 : index
    %c0_10 = arith.constant 0 : index
    %c0_11 = arith.constant 0 : index
    %10 = vector.load %arg6[%c0_8, %c0_9, %c0_10, %c0_11] : memref<1x1x40x128xf32, #tpu.memory_space<vmem>>, vector<1x1x40x128xf32>
    %11 = vector.shape_cast %10 : vector<1x1x40x128xf32> to vector<40x128xf32>
    %12 = vector.shape_cast %9 : vector<40x128xf32> to vector<1x1x40x128xf32>
    tpu.vector_store %arg6[%c0_8, %c0_9, %c0_10, %c0_11], %12 {strides = array<i32>} : memref<1x1x40x128xf32, #tpu.memory_space<vmem>>, vector<1x1x40x128xf32>,
    %13 = arith.extui %0 : i1 to i32
    %c0_i32_12 = arith.constant 0 : i32
    %14 = arith.cmpi ne, %13, %c0_i32_12 : i32
    scf.if %14 {
      %c1_i32_78 = arith.constant 1 : i32
      %115 = tpu.memref_slice %arg10[%c1_i32_78] : memref<3x!tpu.dma_semaphore, #tpu.memory_space<semaphore_mem>> -> memref<1x!tpu.dma_semaphore, #tpu.memory_space<semaphore_mem>>
      %116 = tpu.memref_squeeze %115 : memref<1x!tpu.dma_semaphore, #tpu.memory_space<semaphore_mem>> -> memref<!tpu.dma_semaphore, #tpu.memory_space<semaphore_mem>>
      tpu.wait_dma2 semaphore(%116 : memref<!tpu.dma_semaphore, #tpu.memory_space<semaphore_mem>>) src(%arg4 : memref<128x128xf32, #tpu.memory_space<any>>) dst(%arg8 : memref<128x128xf32, #tpu.memory_space<vmem>>)
    } else {
    }
    %c0_13 = arith.constant 0 : index
    %c0_14 = arith.constant 0 : index
    %15 = vector.load %arg8[%c0_13, %c0_14] : memref<128x128xf32, #tpu.memory_space<vmem>>, vector<128x128xf32>
    %c0_15 = arith.constant 0 : index
    %c0_16 = arith.constant 0 : index
    %16 = vector.load %arg11[%c0_15, %c0_16] : memref<8x128xf32, #tpu.memory_space<vmem>>, vector<8x128xf32>
    %c0_17 = arith.constant 0 : index
    %c0_18 = arith.constant 0 : index
    %17 = vector.load %arg12[%c0_17, %c0_18] : memref<8x128xf32, #tpu.memory_space<vmem>>, vector<8x128xf32>
    %c0_i32_19 = arith.constant 0 : i32
    %c8_i32 = arith.constant 8 : i32
    %18 = arith.muli %c0_i32_19, %c8_i32 : i32
    %19 = tpu.assume_multiple %18, 8 : i32
    %c0_20 = arith.constant 0 : index
    %c0_21 = arith.constant 0 : index
    %20 = arith.index_cast %19 : i32 to index
    %c0_22 = arith.constant 0 : index
    %21 = vector.load %arg6[%c0_20, %c0_21, %20, %c0_22] : memref<1x1x40x128xf32, #tpu.memory_space<vmem>>, vector<1x1x8x128xf32>
    %22 = vector.shape_cast %21 : vector<1x1x8x128xf32> to vector<8x128xf32>
    %cst_23 = arith.constant dense<0.000000e+00> : vector<8x128xf32>
    %23 = tpu.matmul %16, %15, %cst_23 {dimension_numbers = #tpu.dot_dimension_numbers<[1], [0], [0], [1], [0, 0, 1, 1], [], []>} : vector<8x128xf32>, vector<128x128xf32>, vector<8x128xf32> -> vector<8x128xf32>
    %24 = arith.addf %22, %23 : vector<8x128xf32>
    %25 = arith.subf %24, %17 : vector<8x128xf32>
    %cst_24 = arith.constant 0.000000e+00 : f32
    %26 = vector.broadcast %cst_24 : f32 to vector<8x128xf32>
    %27 = arith.maximumf %25, %26 : vector<8x128xf32>
    %cst_25 = arith.constant 2.000000e-01 : f32
    %28 = vector.broadcast %cst_25 : f32 to vector<8x128xf32>
    %29 = arith.mulf %28, %27 : vector<8x128xf32>
    %30 = arith.addf %17, %29 : vector<8x128xf32>
    %cst_26 = arith.constant 0.899999976 : f32
    %31 = vector.broadcast %cst_26 : f32 to vector<8x128xf32>
    %32 = arith.mulf %30, %31 : vector<8x128xf32>
    %c0_27 = arith.constant 0 : index
    %c0_28 = arith.constant 0 : index
    %33 = arith.index_cast %19 : i32 to index
    %c0_29 = arith.constant 0 : index
    %34 = vector.load %arg6[%c0_27, %c0_28, %33, %c0_29] : memref<1x1x40x128xf32, #tpu.memory_space<vmem>>, vector<1x1x8x128xf32>
    %35 = vector.shape_cast %34 : vector<1x1x8x128xf32> to vector<8x128xf32>
    %36 = vector.shape_cast %27 : vector<8x128xf32> to vector<1x1x8x128xf32>
    tpu.vector_store %arg6[%c0_27, %c0_28, %33, %c0_29], %36 {strides = array<i32>} : memref<1x1x40x128xf32, #tpu.memory_space<vmem>>, vector<1x1x8x128xf32>,
    %c1_i32 = arith.constant 1 : i32
    %c8_i32_30 = arith.constant 8 : i32
    %37 = arith.muli %c1_i32, %c8_i32_30 : i32
    %38 = tpu.assume_multiple %37, 8 : i32
    %c0_31 = arith.constant 0 : index
    %c0_32 = arith.constant 0 : index
    %39 = arith.index_cast %38 : i32 to index
    %c0_33 = arith.constant 0 : index
    %40 = vector.load %arg6[%c0_31, %c0_32, %39, %c0_33] : memref<1x1x40x128xf32, #tpu.memory_space<vmem>>, vector<1x1x8x128xf32>
    %41 = vector.shape_cast %40 : vector<1x1x8x128xf32> to vector<8x128xf32>
    %cst_34 = arith.constant dense<0.000000e+00> : vector<8x128xf32>
    %42 = tpu.matmul %27, %15, %cst_34 {dimension_numbers = #tpu.dot_dimension_numbers<[1], [0], [0], [1], [0, 0, 1, 1], [], []>} : vector<8x128xf32>, vector<128x128xf32>, vector<8x128xf32> -> vector<8x128xf32>
    %43 = arith.addf %41, %42 : vector<8x128xf32>
    %44 = arith.subf %43, %32 : vector<8x128xf32>
    %cst_35 = arith.constant 0.000000e+00 : f32
    %45 = vector.broadcast %cst_35 : f32 to vector<8x128xf32>
    %46 = arith.maximumf %44, %45 : vector<8x128xf32>
    %cst_36 = arith.constant 2.000000e-01 : f32
    %47 = vector.broadcast %cst_36 : f32 to vector<8x128xf32>
    %48 = arith.mulf %47, %46 : vector<8x128xf32>
    %49 = arith.addf %32, %48 : vector<8x128xf32>
    %cst_37 = arith.constant 0.899999976 : f32
    %50 = vector.broadcast %cst_37 : f32 to vector<8x128xf32>
    %51 = arith.mulf %49, %50 : vector<8x128xf32>
    %c0_38 = arith.constant 0 : index
    %c0_39 = arith.constant 0 : index
    %52 = arith.index_cast %38 : i32 to index
    %c0_40 = arith.constant 0 : index
    %53 = vector.load %arg6[%c0_38, %c0_39, %52, %c0_40] : memref<1x1x40x128xf32, #tpu.memory_space<vmem>>, vector<1x1x8x128xf32>
    %54 = vector.shape_cast %53 : vector<1x1x8x128xf32> to vector<8x128xf32>
    %55 = vector.shape_cast %46 : vector<8x128xf32> to vector<1x1x8x128xf32>
    tpu.vector_store %arg6[%c0_38, %c0_39, %52, %c0_40], %55 {strides = array<i32>} : memref<1x1x40x128xf32, #tpu.memory_space<vmem>>, vector<1x1x8x128xf32>,
    %c2_i32 = arith.constant 2 : i32
    %c8_i32_41 = arith.constant 8 : i32
    %56 = arith.muli %c2_i32, %c8_i32_41 : i32
    %57 = tpu.assume_multiple %56, 8 : i32
    %c0_42 = arith.constant 0 : index
    %c0_43 = arith.constant 0 : index
    %58 = arith.index_cast %57 : i32 to index
    %c0_44 = arith.constant 0 : index
    %59 = vector.load %arg6[%c0_42, %c0_43, %58, %c0_44] : memref<1x1x40x128xf32, #tpu.memory_space<vmem>>, vector<1x1x8x128xf32>
    %60 = vector.shape_cast %59 : vector<1x1x8x128xf32> to vector<8x128xf32>
    %cst_45 = arith.constant dense<0.000000e+00> : vector<8x128xf32>
    %61 = tpu.matmul %46, %15, %cst_45 {dimension_numbers = #tpu.dot_dimension_numbers<[1], [0], [0], [1], [0, 0, 1, 1], [], []>} : vector<8x128xf32>, vector<128x128xf32>, vector<8x128xf32> -> vector<8x128xf32>
    %62 = arith.addf %60, %61 : vector<8x128xf32>
    %63 = arith.subf %62, %51 : vector<8x128xf32>
    %cst_46 = arith.constant 0.000000e+00 : f32
    %64 = vector.broadcast %cst_46 : f32 to vector<8x128xf32>
    %65 = arith.maximumf %63, %64 : vector<8x128xf32>
    %cst_47 = arith.constant 2.000000e-01 : f32
    %66 = vector.broadcast %cst_47 : f32 to vector<8x128xf32>
    %67 = arith.mulf %66, %65 : vector<8x128xf32>
    %68 = arith.addf %51, %67 : vector<8x128xf32>
    %cst_48 = arith.constant 0.899999976 : f32
    %69 = vector.broadcast %cst_48 : f32 to vector<8x128xf32>
    %70 = arith.mulf %68, %69 : vector<8x128xf32>
    %c0_49 = arith.constant 0 : index
    %c0_50 = arith.constant 0 : index
    %71 = arith.index_cast %57 : i32 to index
    %c0_51 = arith.constant 0 : index
    %72 = vector.load %arg6[%c0_49, %c0_50, %71, %c0_51] : memref<1x1x40x128xf32, #tpu.memory_space<vmem>>, vector<1x1x8x128xf32>
    %73 = vector.shape_cast %72 : vector<1x1x8x128xf32> to vector<8x128xf32>
    %74 = vector.shape_cast %65 : vector<8x128xf32> to vector<1x1x8x128xf32>
    tpu.vector_store %arg6[%c0_49, %c0_50, %71, %c0_51], %74 {strides = array<i32>} : memref<1x1x40x128xf32, #tpu.memory_space<vmem>>, vector<1x1x8x128xf32>,
    %c3_i32 = arith.constant 3 : i32
    %c8_i32_52 = arith.constant 8 : i32
    %75 = arith.muli %c3_i32, %c8_i32_52 : i32
    %76 = tpu.assume_multiple %75, 8 : i32
    %c0_53 = arith.constant 0 : index
    %c0_54 = arith.constant 0 : index
    %77 = arith.index_cast %76 : i32 to index
    %c0_55 = arith.constant 0 : index
    %78 = vector.load %arg6[%c0_53, %c0_54, %77, %c0_55] : memref<1x1x40x128xf32, #tpu.memory_space<vmem>>, vector<1x1x8x128xf32>
    %79 = vector.shape_cast %78 : vector<1x1x8x128xf32> to vector<8x128xf32>
    %cst_56 = arith.constant dense<0.000000e+00> : vector<8x128xf32>
    %80 = tpu.matmul %65, %15, %cst_56 {dimension_numbers = #tpu.dot_dimension_numbers<[1], [0], [0], [1], [0, 0, 1, 1], [], []>} : vector<8x128xf32>, vector<128x128xf32>, vector<8x128xf32> -> vector<8x128xf32>
    %81 = arith.addf %79, %80 : vector<8x128xf32>
    %82 = arith.subf %81, %70 : vector<8x128xf32>
    %cst_57 = arith.constant 0.000000e+00 : f32
    %83 = vector.broadcast %cst_57 : f32 to vector<8x128xf32>
    %84 = arith.maximumf %82, %83 : vector<8x128xf32>
    %cst_58 = arith.constant 2.000000e-01 : f32
    %85 = vector.broadcast %cst_58 : f32 to vector<8x128xf32>
    %86 = arith.mulf %85, %84 : vector<8x128xf32>
    %87 = arith.addf %70, %86 : vector<8x128xf32>
    %cst_59 = arith.constant 0.899999976 : f32
    %88 = vector.broadcast %cst_59 : f32 to vector<8x128xf32>
    %89 = arith.mulf %87, %88 : vector<8x128xf32>
    %c0_60 = arith.constant 0 : index
    %c0_61 = arith.constant 0 : index
    %90 = arith.index_cast %76 : i32 to index
    %c0_62 = arith.constant 0 : index
    %91 = vector.load %arg6[%c0_60, %c0_61, %90, %c0_62] : memref<1x1x40x128xf32, #tpu.memory_space<vmem>>, vector<1x1x8x128xf32>
    %92 = vector.shape_cast %91 : vector<1x1x8x128xf32> to vector<8x128xf32>
    %93 = vector.shape_cast %84 : vector<8x128xf32> to vector<1x1x8x128xf32>
    tpu.vector_store %arg6[%c0_60, %c0_61, %90, %c0_62], %93 {strides = array<i32>} : memref<1x1x40x128xf32, #tpu.memory_space<vmem>>, vector<1x1x8x128xf32>,
    %c4_i32 = arith.constant 4 : i32
    %c8_i32_63 = arith.constant 8 : i32
    %94 = arith.muli %c4_i32, %c8_i32_63 : i32
    %95 = tpu.assume_multiple %94, 8 : i32
    %c0_64 = arith.constant 0 : index
    %c0_65 = arith.constant 0 : index
    %96 = arith.index_cast %95 : i32 to index
    %c0_66 = arith.constant 0 : index
    %97 = vector.load %arg6[%c0_64, %c0_65, %96, %c0_66] : memref<1x1x40x128xf32, #tpu.memory_space<vmem>>, vector<1x1x8x128xf32>
    %98 = vector.shape_cast %97 : vector<1x1x8x128xf32> to vector<8x128xf32>
    %cst_67 = arith.constant dense<0.000000e+00> : vector<8x128xf32>
    %99 = tpu.matmul %84, %15, %cst_67 {dimension_numbers = #tpu.dot_dimension_numbers<[1], [0], [0], [1], [0, 0, 1, 1], [], []>} : vector<8x128xf32>, vector<128x128xf32>, vector<8x128xf32> -> vector<8x128xf32>
    %100 = arith.addf %98, %99 : vector<8x128xf32>
    %101 = arith.subf %100, %89 : vector<8x128xf32>
    %cst_68 = arith.constant 0.000000e+00 : f32
    %102 = vector.broadcast %cst_68 : f32 to vector<8x128xf32>
    %103 = arith.maximumf %101, %102 : vector<8x128xf32>
    %cst_69 = arith.constant 2.000000e-01 : f32
    %104 = vector.broadcast %cst_69 : f32 to vector<8x128xf32>
    %105 = arith.mulf %104, %103 : vector<8x128xf32>
    %106 = arith.addf %89, %105 : vector<8x128xf32>
    %cst_70 = arith.constant 0.899999976 : f32
    %107 = vector.broadcast %cst_70 : f32 to vector<8x128xf32>
    %108 = arith.mulf %106, %107 : vector<8x128xf32>
    %c0_71 = arith.constant 0 : index
    %c0_72 = arith.constant 0 : index
    %109 = arith.index_cast %95 : i32 to index
    %c0_73 = arith.constant 0 : index
    %110 = vector.load %arg6[%c0_71, %c0_72, %109, %c0_73] : memref<1x1x40x128xf32, #tpu.memory_space<vmem>>, vector<1x1x8x128xf32>
    %111 = vector.shape_cast %110 : vector<1x1x8x128xf32> to vector<8x128xf32>
    %112 = vector.shape_cast %103 : vector<8x128xf32> to vector<1x1x8x128xf32>
    tpu.vector_store %arg6[%c0_71, %c0_72, %109, %c0_73], %112 {strides = array<i32>} : memref<1x1x40x128xf32, #tpu.memory_space<vmem>>, vector<1x1x8x128xf32>,
    %c5_i32 = arith.constant 5 : i32
    %c0_74 = arith.constant 0 : index
    %c0_75 = arith.constant 0 : index
    %113 = vector.load %arg11[%c0_74, %c0_75] : memref<8x128xf32, #tpu.memory_space<vmem>>, vector<8x128xf32>
    tpu.vector_store %arg11[%c0_74, %c0_75], %103 {strides = array<i32>} : memref<8x128xf32, #tpu.memory_space<vmem>>, vector<8x128xf32>,
    %c0_76 = arith.constant 0 : index
    %c0_77 = arith.constant 0 : index
    %114 = vector.load %arg12[%c0_76, %c0_77] : memref<8x128xf32, #tpu.memory_space<vmem>>, vector<8x128xf32>
    tpu.vector_store %arg12[%c0_76, %c0_77], %108 {strides = array<i32>} : memref<8x128xf32, #tpu.memory_space<vmem>>, vector<8x128xf32>,
    return
  }
  func.func @transform_0(%arg0: i32, %arg1: i32) -> (i32, i32, i32, i32) {
    %c0_i32 = arith.constant 0 : i32
    %c0_i32_0 = arith.constant 0 : i32
    %c0_i32_1 = arith.constant 0 : i32
    return %arg0, %arg1, %c0_i32, %c0_i32_0 : i32, i32, i32, i32
  }
  func.func @transform_4(%arg0: i32, %arg1: i32) -> (i32, i32, i32, i32) {
    %c0_i32 = arith.constant 0 : i32
    %c0_i32_0 = arith.constant 0 : i32
    %c0_i32_1 = arith.constant 0 : i32
    return %arg0, %arg1, %c0_i32, %c0_i32_0 : i32, i32, i32, i32
  }
}

</mosaic_0001>

<llo_original>
// kernel: tpu_custom_call.1
$region0: #{tpu_custom_call.1}
  #allocation0 [shape = 'u32[]', space=smem, size = 0x4, offset = 0x4, fixed_abs, tag = 'smem constant byte address 0x4 - core index']
  #allocation1 [shape = 'u32[144,128]{1,0:T(1,128)}', space=vmem, size = 0x12000, scoped, tag = 'internal scratch']
  #allocation2 [shape = 'f32[16,128]{1,0:T(8,128)}', space=vmem, size = 0x2000, scoped, tag = 'scratch operand']
  #allocation3 [shape = 'f32[128,128]{1,0:T(8,128)}', space=vmem, size = 0x10000, scoped, tag = 'scratch operand']
  #allocation4 [shape = 'f32[1,128]{1,0:T(1,128)}', space=vmem, size = 0x200, scoped, tag = 'scratch operand']
  #allocation5 [shape = 's32[3]{0}', space=sflag, size = 0xc, scoped, tag = 'scratch operand']
  #allocation6 [shape = 'f32[8,128]{1,0:T(8,128)}', space=vmem, size = 0x1000, scoped, tag = 'scratch operand']
  #allocation7 [shape = 'f32[8,128]{1,0:T(8,128)}', space=vmem, size = 0x1000, scoped, tag = 'scratch operand']
  #allocation10 [shape = 's32[]', space=sflag, size = 0x4, offset = 0, fixed_abs, tag = 'sflag constant byte address 0x0 - dummy sync flag']
  #allocation11 [shape = 's32[]', space=sflag, size = 0x4, offset = 0, fixed_abs, tag = 'sflag constant byte address 0x0 - dummy sync flag']
  #allocation12 [shape = 's32[]', space=sflag, size = 0x4, offset = 0, fixed_abs, tag = 'sflag constant byte address 0x0 - dummy sync flag']
  %s0 = inlined_call_operand.vmem [shape: f32[2,4,40,16], index: 0, kind: input, shape index: {}]
  %s1 = inlined_call_operand.vmem [shape: f32[16,128], index: 1, kind: input, shape index: {}]
  %s2 = inlined_call_operand.vmem [shape: f32[128,128], index: 2, kind: input, shape index: {}]
  %s3 = inlined_call_operand.vmem [shape: f32[1,128], index: 3, kind: input, shape index: {}]
  %s4 = inlined_call_operand.hbm [shape: f32[2,4,40,128], index: 4, kind: output, shape index: {}]
  %s5 = sld [smem:[#allocation0]]
  $region143: #{tpu_custom_call.1} parent=0
    _
  %s7 = ssub.s32 1, %s5
  %s8 = scalar_select 0, %s7, %s5
  $region1: #{tpu_custom_call.1} parent=0
    #allocation8 [shape = 'u8[40960]{0}', space=vmem, size = 0xa000, scoped, tag = 'output window, operand 0']
    #allocation9 [shape = 's32[2]{0}', space=sflag, size = 0x8, scoped, tag = 'scoped memory for tpu_custom_call.1']
    %9 = vsyncpa [#allocation9], 0
    %s10 = scalar_lea.sflag [#allocation9], 1
    %11 = vsyncpa %s10, 0
    loop: start=0, step=1, limit=10
    $region2: #{tpu_custom_call.1} parent=1 // loop_pre_header
      _
    $region3: #{tpu_custom_call.1} parent=1 // loop_header
      %s13 = sphi 0, %s17
      %p14 = scmp.ge.s32.totalorder %s13, 10
      %s20 = sphi 0, %s32
      %s21 = sphi 0, %s28
      %s22 = sphi 0, %s20
      %s23 = sphi 0, %s21
      %s24 = sphi 0, %s22
      %s25 = sphi 0, %s23
      %s37 = sphi 0, %s39
      %s40 = sphi 0, %s37
      %s41 = sphi 0, %s40
      %s57 = sphi 0, %s41
      %s65 = sphi 0, %s67
      %s68 = sphi 0, %s65
      %s69 = sphi 0, %s68
      %s85 = sphi 0, %s69
    $region4: #{tpu_custom_call.1} parent=1 // loop_header_branch
      %16 = sbr.rel (%p14) target = $region8
    $region5: #{tpu_custom_call.1} parent=1 // loop_body
      %s18 = ssub.s32 %s13, 1
      %s19 = ssub.s32 %s13, 2
      %s26 = sadd.s32 1, %s21
      %p27 = scmp.ge.s32.totalorder %s26, 4
      %s28 = scalar_select %p27, 0, %s26
      %s29 = sadd.s32 1, %s20
      %s30 = scalar_select %p27, %s29, %s20
      %p31 = scmp.ge.s32.totalorder %s30, 2
      %s32 = scalar_select %p31, 0, %s30
      %s33 = ssub.s32 %s20, %s32
      %s34 = ssub.s32 %s21, %s28
      %s35 = sor.u32 %s33, %s34
      %p36 = scmp.eq.s32.totalorder %s35, 0
      %s38 = sadd.s32 %s37, 1
      %s39 = scalar_select %p36, %s37, %s38
      %p42 = pneg %p36
      %p43 = scmp.eq.s32.totalorder %s13, 7
      %p44 = por %p42, %p43
      %p45 = scmp.ne.s32.totalorder %s37, %s40
      %p46 = scmp.eq.s32.totalorder %s13, 0
      %p47 = por %p45, %p46
      %p48 = scmp.ne.s32.totalorder %s37, %s40
      %p49 = scmp.eq.s32.totalorder %s18, 7
      %p50 = por %p48, %p49
      %p51 = scmp.ne.s32.totalorder %s40, %s41
      %p52 = scmp.eq.s32.totalorder %s18, 0
      %p53 = por %p51, %p52
      %p54 = scmp.ne.s32.totalorder %s40, %s41
      %p55 = scmp.eq.s32.totalorder %s19, 7
      %p56 = por %p54, %p55
      %p58 = scmp.ne.s32.totalorder %s41, %s57
      %p59 = scmp.eq.s32.totalorder %s19, 0
      %p60 = por %p58, %p59
      %s61 = ssub.s32 %s20, %s32
      %s62 = ssub.s32 %s21, %s28
      %s63 = sor.u32 %s61, %s62
      %p64 = scmp.eq.s32.totalorder %s63, 0
      %s66 = sadd.s32 %s65, 1
      %s67 = scalar_select %p64, %s65, %s66
      %p70 = pneg %p64
      %p71 = scmp.eq.s32.totalorder %s13, 7
      %p72 = por %p70, %p71
      %p73 = scmp.ne.s32.totalorder %s65, %s68
      %p74 = scmp.eq.s32.totalorder %s13, 0
      %p75 = por %p73, %p74
      %p76 = scmp.ne.s32.totalorder %s65, %s68
      %p77 = scmp.eq.s32.totalorder %s18, 7
      %p78 = por %p76, %p77
      %p79 = scmp.ne.s32.totalorder %s68, %s69
      %p80 = scmp.eq.s32.totalorder %s18, 0
      %p81 = por %p79, %p80
      %p82 = scmp.ne.s32.totalorder %s68, %s69
      %p83 = scmp.eq.s32.totalorder %s19, 7
      %p84 = por %p82, %p83
      %p86 = scmp.ne.s32.totalorder %s69, %s85
      %p87 = scmp.eq.s32.totalorder %s19, 0
      %p88 = por %p86, %p87
      %p89 = scmp.le.s32.totalorder 1, %s13
      %p90 = scmp.lt.s32.totalorder %s13, 9
      %p91 = pnand %p89, %p90
      %p92 = pneg %p91
      // Predicated region
      $region9: #{tpu_custom_call.1} parent=5 // pred_check
        _
      $region10: #{tpu_custom_call.1} parent=5 // pred_check_branch
        %94 = sbr.rel (%p91) target = $region12
      $region11: #{tpu_custom_call.1} parent=5 // pred_region
        %s95 = ssub.s32 %s13, 1
      $region12: #{tpu_custom_call.1} parent=5 // pred_fallthru
        _
      %p96 = scmp.lt.s32.totalorder %s13, 8
      // Predicated region
      $region13: #{tpu_custom_call.1} parent=5 // pred_check
        %p97 = pneg %p96
      $region14: #{tpu_custom_call.1} parent=5 // pred_check_branch
        %99 = sbr.rel (%p97) target = $region16
      $region15: #{tpu_custom_call.1} parent=5 // pred_region
        // Predicated region
        $region17: #{tpu_custom_call.1} parent=15 // pred_check
          %p100 = pneg %p47
        $region18: #{tpu_custom_call.1} parent=15 // pred_check_branch
          %102 = sbr.rel (%p100) target = $region20
        $region19: #{tpu_custom_call.1} parent=15 // pred_region
          %p103 = scmp.lt.s32.totalorder %s20, 1
          %s104 = scalar_select %p103, %s20, 1
          %p105 = scmp.lt.s32.totalorder %s21, 3
          %s106 = scalar_select %p105, %s21, 3
          %s107 = smul.addr %s106, 5
          %s108 = smul.addr %s104, 20
          %s109 = sadd.s32 %s107, %s108
          %s110 = smul.addr %s109, 8
          %s111 = scalar_lea.vmem %s0, %s110
        $region20: #{tpu_custom_call.1} parent=15 // pred_fallthru
          _
      $region16: #{tpu_custom_call.1} parent=5 // pred_fallthru
        _
      %p112 = scmp.le.s32.totalorder 1, %s13
      %p113 = scmp.lt.s32.totalorder %s13, 9
      %p114 = pnand %p112, %p113
      %p115 = pneg %p114
      // Predicated region
      $region21: #{tpu_custom_call.1} parent=5 // pred_check
        _
      $region22: #{tpu_custom_call.1} parent=5 // pred_check_branch
        %117 = sbr.rel (%p114) target = $region24
      $region23: #{tpu_custom_call.1} parent=5 // pred_region
        %s118 = ssub.s32 %s13, 1
        %p119 = scmp.lt.s32.totalorder %s22, 1
        %s120 = scalar_select %p119, %s22, 1
        %p121 = scmp.lt.s32.totalorder %s23, 3
        %s122 = scalar_select %p121, %s23, 3
        %s123 = smul.addr %s122, 5
        %s124 = smul.addr %s120, 20
        %s125 = sadd.s32 %s123, %s124
        %s126 = smul.addr %s125, 8
        %s127 = scalar_lea.vmem %s0, %s126
        %p128 = pneg %p53
        %p129 = pneg %p50
        %p130 = pneg %p81
        %p131 = pneg %p78
        %s132 = sand.u32 %s68, 1
        %s133 = scalar_lea.sflag [#allocation9], %s132
        %s134 = sand.u32 %s68, 1
        %s135 = smul.addr %s134, 40
        %s136 = scalar_lea.vmem [#allocation8], %s135
        %p137 = scmp.lt.s32.totalorder %s22, 1
        %s138 = scalar_select %p137, %s22, 1
        %p139 = scmp.lt.s32.totalorder %s23, 3
        %s140 = scalar_select %p139, %s23, 3
        %s141 = smul.addr %s140, 5
        %s142 = smul.addr %s138, 20
        %s143 = sadd.s32 %s141, %s142
        %s144 = smul.addr %s143, 8
        %s145 = scalar_lea.vmem %s0, %s144
        %p146 = scmp.eq.s32.totalorder %s23, 0
        // Predicated region
        $region25: #{tpu_custom_call.1} parent=23 // pred_check
          %p147 = pneg %p146
        $region26: #{tpu_custom_call.1} parent=23 // pred_check_branch
          %149 = sbr.rel (%p147) target = $region28
        $region27: #{tpu_custom_call.1} parent=23 // pred_region
          %p151 = scmp.lt.u32.totalorder 16, 8
          %p152 = pneg %p151
          // Predicated region
          $region29: #{tpu_custom_call.1} parent=27 // pred_check
            _
          $region30: #{tpu_custom_call.1} parent=27 // pred_check_branch
            %154 = sbr.rel (%p151) target = $region32
          $region31: #{tpu_custom_call.1} parent=27 // pred_region
            %s169 = sand.u32 16, 7
            %p170 = scmp.eq.s32.totalorder %s169, 0
            // Predicated region
            $region44: #{tpu_custom_call.1} parent=31 // pred_check
              %p171 = pneg %p170
            $region45: #{tpu_custom_call.1} parent=31 // pred_check_branch
              %173 = sbr.rel (%p171) target = $region47
            $region46: #{tpu_custom_call.1} parent=31 // pred_region
              loop: start=0, step=1, limit=1
              $region48: #{tpu_custom_call.1} parent=46 // loop_pre_header
                _
              $region49: #{tpu_custom_call.1} parent=46 // loop_header
                %s175 = sphi 0, %s179
                %p176 = scmp.ge.s32.totalorder %s175, 1
                %s180 = sphi %s1, %s1
                %s181 = sphi [#allocation2], [#allocation2]
              $region50: #{tpu_custom_call.1} parent=46 // loop_header_branch
                %178 = sbr.rel (%p176) target = $region54
              $region51: #{tpu_custom_call.1} parent=46 // loop_body
                %v182 = vld [vmem:[%s180] sm:$0xff]
                %183 = vst [vmem:[%s181] sm:$0xff] %v182
                %v184 = vld [vmem:[%s180 + $0x8] sm:$0xff]
                %185 = vst [vmem:[%s181 + $0x8] sm:$0xff] %v184
              $region52: #{tpu_custom_call.1} parent=46 // loop_footer
                %s179 = sadd.s32 1, %s175
              $region53: #{tpu_custom_call.1} parent=46 // loop_footer_branch
                %174 = sbr.rel target = $region49
              $region54: #{tpu_custom_call.1} parent=46 // loop_exit
                _
            $region47: #{tpu_custom_call.1} parent=31 // pred_fallthru
              _
            %p186 = pneg %p170
            // Predicated region
            $region55: #{tpu_custom_call.1} parent=31 // pred_check
              _
            $region56: #{tpu_custom_call.1} parent=31 // pred_check_branch
              %188 = sbr.rel (%p170) target = $region58
            $region57: #{tpu_custom_call.1} parent=31 // pred_region
              %s189 = sand.u32 16, 7
            $region58: #{tpu_custom_call.1} parent=31 // pred_fallthru
              _
          $region32: #{tpu_custom_call.1} parent=27 // pred_fallthru
            _
          // Predicated region
          $region33: #{tpu_custom_call.1} parent=27 // pred_check
            %p155 = pneg %p151
          $region34: #{tpu_custom_call.1} parent=27 // pred_check_branch
            %157 = sbr.rel (%p155) target = $region36
          $region35: #{tpu_custom_call.1} parent=27 // pred_region
            %s158 = sshllo.u32 0, 16
            loop: start=0, step=1, limit=1
            $region37: #{tpu_custom_call.1} parent=35 // loop_pre_header
              _
            $region38: #{tpu_custom_call.1} parent=35 // loop_header
              %s160 = sphi 0, %s164
              %p161 = scmp.ge.s32.totalorder %s160, 1
              %s165 = sphi %s1, %s1
              %s166 = sphi [#allocation2], [#allocation2]
            $region39: #{tpu_custom_call.1} parent=35 // loop_header_branch
              %163 = sbr.rel (%p161) target = $region43
            $region40: #{tpu_custom_call.1} parent=35 // loop_body
              %v167 = vld [vmem:[%s165] sm:%s158]
              %168 = vst [vmem:[%s166] sm:%s158] %v167
            $region41: #{tpu_custom_call.1} parent=35 // loop_footer
              %s164 = sadd.s32 1, %s160
            $region42: #{tpu_custom_call.1} parent=35 // loop_footer_branch
              %159 = sbr.rel target = $region38
            $region43: #{tpu_custom_call.1} parent=35 // loop_exit
              _
          $region36: #{tpu_custom_call.1} parent=27 // pred_fallthru
            _
          // Predicated region
          $region59: #{tpu_custom_call.1} parent=27 // pred_check
            _
          $region60: #{tpu_custom_call.1} parent=27 // pred_check_branch
            %192 = sbr.rel (0) target = $region62
          $region61: #{tpu_custom_call.1} parent=27 // pred_region
            %193 = vsyncadd [#allocation5], 256
          $region62: #{tpu_custom_call.1} parent=27 // pred_fallthru
            _
          %s194 = scalar_lea.sflag [#allocation5], 1
          %p196 = scmp.lt.u32.totalorder 128, 8
          %p197 = pneg %p196
          // Predicated region
          $region63: #{tpu_custom_call.1} parent=27 // pred_check
            _
          $region64: #{tpu_custom_call.1} parent=27 // pred_check_branch
            %199 = sbr.rel (%p196) target = $region66
          $region65: #{tpu_custom_call.1} parent=27 // pred_region
            %s214 = sand.u32 128, 7
            %p215 = scmp.eq.s32.totalorder %s214, 0
            // Predicated region
            $region78: #{tpu_custom_call.1} parent=65 // pred_check
              %p216 = pneg %p215
            $region79: #{tpu_custom_call.1} parent=65 // pred_check_branch
              %218 = sbr.rel (%p216) target = $region81
            $region80: #{tpu_custom_call.1} parent=65 // pred_region
              loop: start=0, step=1, limit=1
              $region82: #{tpu_custom_call.1} parent=80 // loop_pre_header
                _
              $region83: #{tpu_custom_call.1} parent=80 // loop_header
                %s220 = sphi 0, %s224
                %p221 = scmp.ge.s32.totalorder %s220, 1
                %s225 = sphi %s2, %s2
                %s226 = sphi [#allocation3], [#allocation3]
              $region84: #{tpu_custom_call.1} parent=80 // loop_header_branch
                %223 = sbr.rel (%p221) target = $region88
              $region85: #{tpu_custom_call.1} parent=80 // loop_body
                %v227 = vld [vmem:[%s225] sm:$0xff]
                %228 = vst [vmem:[%s226] sm:$0xff] %v227
                %v229 = vld [vmem:[%s225 + $0x8] sm:$0xff]
                %230 = vst [vmem:[%s226 + $0x8] sm:$0xff] %v229
                %v231 = vld [vmem:[%s225 + $0x10] sm:$0xff]
                %232 = vst [vmem:[%s226 + $0x10] sm:$0xff] %v231
                %v233 = vld [vmem:[%s225 + $0x18] sm:$0xff]
                %234 = vst [vmem:[%s226 + $0x18] sm:$0xff] %v233
                %v235 = vld [vmem:[%s225 + $0x20] sm:$0xff]
                %236 = vst [vmem:[%s226 + $0x20] sm:$0xff] %v235
                %v237 = vld [vmem:[%s225 + $0x28] sm:$0xff]
                %238 = vst [vmem:[%s226 + $0x28] sm:$0xff] %v237
                %v239 = vld [vmem:[%s225 + $0x30] sm:$0xff]
                %240 = vst [vmem:[%s226 + $0x30] sm:$0xff] %v239
                %v241 = vld [vmem:[%s225 + $0x38] sm:$0xff]
                %242 = vst [vmem:[%s226 + $0x38] sm:$0xff] %v241
                %v243 = vld [vmem:[%s225 + $0x40] sm:$0xff]
                %244 = vst [vmem:[%s226 + $0x40] sm:$0xff] %v243
                %v245 = vld [vmem:[%s225 + $0x48] sm:$0xff]
                %246 = vst [vmem:[%s226 + $0x48] sm:$0xff] %v245
                %v247 = vld [vmem:[%s225 + $0x50] sm:$0xff]
                %248 = vst [vmem:[%s226 + $0x50] sm:$0xff] %v247
                %v249 = vld [vmem:[%s225 + $0x58] sm:$0xff]
                %250 = vst [vmem:[%s226 + $0x58] sm:$0xff] %v249
                %v251 = vld [vmem:[%s225 + $0x60] sm:$0xff]
                %252 = vst [vmem:[%s226 + $0x60] sm:$0xff] %v251
                %v253 = vld [vmem:[%s225 + $0x68] sm:$0xff]
                %254 = vst [vmem:[%s226 + $0x68] sm:$0xff] %v253
                %v255 = vld [vmem:[%s225 + $0x70] sm:$0xff]
                %256 = vst [vmem:[%s226 + $0x70] sm:$0xff] %v255
                %v257 = vld [vmem:[%s225 + $0x78] sm:$0xff]
                %258 = vst [vmem:[%s226 + $0x78] sm:$0xff] %v257
              $region86: #{tpu_custom_call.1} parent=80 // loop_footer
                %s224 = sadd.s32 1, %s220
              $region87: #{tpu_custom_call.1} parent=80 // loop_footer_branch
                %219 = sbr.rel target = $region83
              $region88: #{tpu_custom_call.1} parent=80 // loop_exit
                _
            $region81: #{tpu_custom_call.1} parent=65 // pred_fallthru
              _
            %p259 = pneg %p215
            // Predicated region
            $region89: #{tpu_custom_call.1} parent=65 // pred_check
              _
            $region90: #{tpu_custom_call.1} parent=65 // pred_check_branch
              %261 = sbr.rel (%p215) target = $region92
            $region91: #{tpu_custom_call.1} parent=65 // pred_region
              %s262 = sand.u32 128, 7
            $region92: #{tpu_custom_call.1} parent=65 // pred_fallthru
              _
          $region66: #{tpu_custom_call.1} parent=27 // pred_fallthru
            _
          // Predicated region
          $region67: #{tpu_custom_call.1} parent=27 // pred_check
            %p200 = pneg %p196
          $region68: #{tpu_custom_call.1} parent=27 // pred_check_branch
            %202 = sbr.rel (%p200) target = $region70
          $region69: #{tpu_custom_call.1} parent=27 // pred_region
            %s203 = sshllo.u32 0, 128
            loop: start=0, step=1, limit=1
            $region71: #{tpu_custom_call.1} parent=69 // loop_pre_header
              _
            $region72: #{tpu_custom_call.1} parent=69 // loop_header
              %s205 = sphi 0, %s209
              %p206 = scmp.ge.s32.totalorder %s205, 1
              %s210 = sphi %s2, %s2
              %s211 = sphi [#allocation3], [#allocation3]
            $region73: #{tpu_custom_call.1} parent=69 // loop_header_branch
              %208 = sbr.rel (%p206) target = $region77
            $region74: #{tpu_custom_call.1} parent=69 // loop_body
              %v212 = vld [vmem:[%s210] sm:%s203]
              %213 = vst [vmem:[%s211] sm:%s203] %v212
            $region75: #{tpu_custom_call.1} parent=69 // loop_footer
              %s209 = sadd.s32 1, %s205
            $region76: #{tpu_custom_call.1} parent=69 // loop_footer_branch
              %204 = sbr.rel target = $region72
            $region77: #{tpu_custom_call.1} parent=69 // loop_exit
              _
          $region70: #{tpu_custom_call.1} parent=27 // pred_fallthru
            _
          // Predicated region
          $region93: #{tpu_custom_call.1} parent=27 // pred_check
            _
          $region94: #{tpu_custom_call.1} parent=27 // pred_check_branch
            %265 = sbr.rel (0) target = $region96
          $region95: #{tpu_custom_call.1} parent=27 // pred_region
            %266 = vsyncadd %s194, 2048
          $region96: #{tpu_custom_call.1} parent=27 // pred_fallthru
            _
          %s267 = scalar_lea.sflag [#allocation5], 2
          %p269 = scmp.lt.u32.totalorder 1, 8
          %p270 = pneg %p269
          // Predicated region
          $region97: #{tpu_custom_call.1} parent=27 // pred_check
            _
          $region98: #{tpu_custom_call.1} parent=27 // pred_check_branch
            %272 = sbr.rel (%p269) target = $region100
          $region99: #{tpu_custom_call.1} parent=27 // pred_region
            %s287 = sand.u32 1, 7
            %p288 = scmp.eq.s32.totalorder %s287, 0
            %p289 = pneg %p288
            // Predicated region
            $region112: #{tpu_custom_call.1} parent=99 // pred_check
              _
            $region113: #{tpu_custom_call.1} parent=99 // pred_check_branch
              %291 = sbr.rel (%p288) target = $region115
            $region114: #{tpu_custom_call.1} parent=99 // pred_region
              %s292 = sand.u32 1, 7
              %s293 = ssub.s32 1, %s292
              %s294 = scalar_lea.vmem %s3, %s293
              %s295 = ssub.s32 1, %s292
              %s296 = scalar_lea.vmem [#allocation4], %s295
              %s297 = sshllo.u32 0, %s292
              loop: start=0, step=1, limit=1
              $region116: #{tpu_custom_call.1} parent=114 // loop_pre_header
                _
              $region117: #{tpu_custom_call.1} parent=114 // loop_header
                %s299 = sphi 0, %s303
                %p300 = scmp.ge.s32.totalorder %s299, 1
                %s304 = sphi %s294, %s294
                %s305 = sphi %s296, %s296
              $region118: #{tpu_custom_call.1} parent=114 // loop_header_branch
                %302 = sbr.rel (%p300) target = $region122
              $region119: #{tpu_custom_call.1} parent=114 // loop_body
                %v306 = vld [vmem:[%s304] sm:%s297]
                %307 = vst [vmem:[%s305] sm:%s297] %v306
              $region120: #{tpu_custom_call.1} parent=114 // loop_footer
                %s303 = sadd.s32 1, %s299
              $region121: #{tpu_custom_call.1} parent=114 // loop_footer_branch
                %298 = sbr.rel target = $region117
              $region122: #{tpu_custom_call.1} parent=114 // loop_exit
                _
            $region115: #{tpu_custom_call.1} parent=99 // pred_fallthru
              _
          $region100: #{tpu_custom_call.1} parent=27 // pred_fallthru
            _
          // Predicated region
          $region101: #{tpu_custom_call.1} parent=27 // pred_check
            %p273 = pneg %p269
          $region102: #{tpu_custom_call.1} parent=27 // pred_check_branch
            %275 = sbr.rel (%p273) target = $region104
          $region103: #{tpu_custom_call.1} parent=27 // pred_region
            %s276 = sshllo.u32 0, 1
            loop: start=0, step=1, limit=1
            $region105: #{tpu_custom_call.1} parent=103 // loop_pre_header
              _
            $region106: #{tpu_custom_call.1} parent=103 // loop_header
              %s278 = sphi 0, %s282
              %p279 = scmp.ge.s32.totalorder %s278, 1
              %s283 = sphi %s3, %s3
              %s284 = sphi [#allocation4], [#allocation4]
            $region107: #{tpu_custom_call.1} parent=103 // loop_header_branch
              %281 = sbr.rel (%p279) target = $region111
            $region108: #{tpu_custom_call.1} parent=103 // loop_body
              %v285 = vld [vmem:[%s283] sm:%s276]
              %286 = vst [vmem:[%s284] sm:%s276] %v285
            $region109: #{tpu_custom_call.1} parent=103 // loop_footer
              %s282 = sadd.s32 1, %s278
            $region110: #{tpu_custom_call.1} parent=103 // loop_footer_branch
              %277 = sbr.rel target = $region106
            $region111: #{tpu_custom_call.1} parent=103 // loop_exit
              _
          $region104: #{tpu_custom_call.1} parent=27 // pred_fallthru
            _
          // Predicated region
          $region123: #{tpu_custom_call.1} parent=27 // pred_check
            _
          $region124: #{tpu_custom_call.1} parent=27 // pred_check_branch
            %310 = sbr.rel (0) target = $region126
          $region125: #{tpu_custom_call.1} parent=27 // pred_region
            %311 = vsyncadd %s267, 16
          $region126: #{tpu_custom_call.1} parent=27 // pred_fallthru
            _
          %312 = vst [vmem:[#allocation6] sm:$0xff] 0.0
          %313 = vst [vmem:[#allocation7] sm:$0xff] 0.0
          %s314 = smul.u32 16, 1
          %s315 = sshll.u32 %s314, 4
          %316 = dma.done [#allocation5], %s315
          %s317 = smul.u32 1, 1
          %s318 = sshll.u32 %s317, 4
          %319 = dma.done %s267, %s318
        $region28: #{tpu_custom_call.1} parent=23 // pred_fallthru
          _
        %v320 = vld [vmem:[%s145] sm:$0xff]
        %v321 = vld [vmem:[%s145 + $0x8] sm:$0xff]
        %v322 = vld [vmem:[%s145 + $0x10] sm:$0xff]
        %v323 = vld [vmem:[%s145 + $0x18] sm:$0xff]
        %v324 = vld [vmem:[%s145 + $0x20] sm:$0xff]
        %v325 = vld [vmem:[#allocation2] sm:$0xff]
        %v326 = vld [vmem:[#allocation2 + $0x8] sm:$0xff]
        %v327 = vld [vmem:[#allocation4] sm:$0x1]
        %v329 = vlaneseq
        %v330 = vshrl.u32 %v329, 7
        %v331 = vsub.s32 0, %v330
        %v332 = vrot.slane %v327, %v331
        %vm334 = vcmask 130048
        %v336 = vsel %vm334, %v320, 0
        %v339 = vsel %vm334, %v321, 0
        %v342 = vsel %vm334, %v322, 0
        %v345 = vsel %vm334, %v323, 0
        %v348 = vsel %vm334, %v324, 0
        %350 = vmatprep.subr.mxu0 0.0
        %351 = vmatpush1.msra.mxu0 %v325
        %352 = vmatprep.subr.mxu0 0.0
        %353 = vmatpush1.msra.mxu0 %v326
        %354 = vmatprep.subr.mxu0 0.0
        %355 = vmatpush1.msra.mxu0 0.0
        %356 = vmatprep.subr.mxu0 0.0
        %357 = vmatpush1.msra.mxu0 0.0
        %358 = vmatprep.subr.mxu0 0.0
        %359 = vmatpush1.msra.mxu0 0.0
        %360 = vmatprep.subr.mxu0 0.0
        %361 = vmatpush1.msra.mxu0 0.0
        %362 = vmatprep.subr.mxu0 0.0
        %363 = vmatpush1.msra.mxu0 0.0
        %364 = vmatprep.subr.mxu0 0.0
        %365 = vmatpush1.msra.mxu0 0.0
        %366 = vmatprep.subr.mxu0 0.0
        %367 = vmatpush1.msra.mxu0 0.0
        %368 = vmatprep.subr.mxu0 0.0
        %369 = vmatpush1.msra.mxu0 0.0
        %370 = vmatprep.subr.mxu0 0.0
        %371 = vmatpush1.msra.mxu0 0.0
        %372 = vmatprep.subr.mxu0 0.0
        %373 = vmatpush1.msra.mxu0 0.0
        %374 = vmatprep.subr.mxu0 0.0
        %375 = vmatpush1.msra.mxu0 0.0
        %376 = vmatprep.subr.mxu0 0.0
        %377 = vmatpush1.msra.mxu0 0.0
        %378 = vmatprep.subr.mxu0 0.0
        %379 = vmatpush1.msra.mxu0 0.0
        %380 = vmatprep.subr.mxu0 0.0
        %381 = vmatpush1.msra.mxu0 0.0
        %382 = vmatprep.subr.mxu0 0.0
        %383 = vmatpush1.msra.mxu0 0.0
        %384 = vmatprep.subr.mxu0 0.0
        %385 = vmatpush1.msra.mxu0 0.0
        %386 = vmatprep.subr.mxu0 0.0
        %387 = vmatpush1.msra.mxu0 0.0
        %388 = vmatprep.subr.mxu0 0.0
        %389 = vmatpush1.msra.mxu0 0.0
        %390 = vmatprep.subr.mxu0 0.0
        %391 = vmatpush1.msra.mxu0 0.0
        %392 = vmatprep.subr.mxu0 0.0
        %393 = vmatpush1.msra.mxu0 0.0
        %394 = vmatprep.subr.mxu0 0.0
        %395 = vmatpush1.msra.mxu0 0.0
        %396 = vmatprep.subr.mxu0 0.0
        %397 = vmatpush1.msra.mxu0 0.0
        %398 = vmatprep.subr.mxu0 0.0
        %399 = vmatpush1.msra.mxu0 0.0
        %400 = vmatprep.subr.mxu0 0.0
        %401 = vmatpush1.msra.mxu0 0.0
        %402 = vmatprep.subr.mxu0 0.0
        %403 = vmatpush1.msra.mxu0 0.0
        %404 = vmatprep.subr.mxu0 0.0
        %405 = vmatpush1.msra.mxu0 0.0
        %406 = vmatprep.subr.mxu0 0.0
        %407 = vmatpush1.msra.mxu0 0.0
        %408 = vmatprep.subr.mxu0 0.0
        %409 = vmatpush1.msra.mxu0 0.0
        %410 = vmatprep.subr.mxu0 0.0
        %411 = vmatpush1.msra.mxu0 0.0
        %412 = vmatprep.subr.mxu0 0.0
        %413 = vmatpush1.msra.mxu0 0.0
        %414 = vmatprep.mubr.f32.mxu0 0.0
        %415 = vmatmul.mubr.f32.gmra.mrb[0].mxu0 %v336
        %v416 = vpop.f32.mrb[0].mxu0
        %v417 = vadd.f32 %v332, %v416
        %v418 = vpop.f32.mrb[0].mxu0
        %419 = vmatprep.mubr.f32.mxu0 0.0
        %420 = vmatmul.mubr.f32.gmra.mrb[0].mxu0 %v339
        %v421 = vpop.f32.mrb[0].mxu0
        %v422 = vadd.f32 %v332, %v421
        %v423 = vpop.f32.mrb[0].mxu0
        %424 = vmatprep.mubr.f32.mxu0 0.0
        %425 = vmatmul.mubr.f32.gmra.mrb[0].mxu0 %v342
        %v426 = vpop.f32.mrb[0].mxu0
        %v427 = vadd.f32 %v332, %v426
        %v428 = vpop.f32.mrb[0].mxu0
        %429 = vmatprep.mubr.f32.mxu0 0.0
        %430 = vmatmul.mubr.f32.gmra.mrb[0].mxu0 %v345
        %v431 = vpop.f32.mrb[0].mxu0
        %v432 = vadd.f32 %v332, %v431
        %v433 = vpop.f32.mrb[0].mxu0
        %434 = vmatprep.mubr.f32.mxu0 0.0
        %435 = vmatmul.mubr.f32.gmra.mrb[0].mxu0 %v348
        %v436 = vpop.f32.mrb[0].mxu0
        %v437 = vadd.f32 %v332, %v436
        %v438 = vpop.f32.mrb[0].mxu0
        %439 = vdwg.mxu0
        %440 = vst [vmem:[%s136] sm:$0xff] %v417
        %441 = vst [vmem:[%s136 + $0x8] sm:$0xff] %v422
        %442 = vst [vmem:[%s136 + $0x10] sm:$0xff] %v427
        %443 = vst [vmem:[%s136 + $0x18] sm:$0xff] %v432
        %444 = vst [vmem:[%s136 + $0x20] sm:$0xff] %v437
        // Predicated region
        $region127: #{tpu_custom_call.1} parent=23 // pred_check
          %p445 = pneg %p146
        $region128: #{tpu_custom_call.1} parent=23 // pred_check_branch
          %447 = sbr.rel (%p445) target = $region130
        $region129: #{tpu_custom_call.1} parent=23 // pred_region
          %s448 = scalar_lea.sflag [#allocation5], 1
          %s449 = smul.u32 128, 1
          %s450 = sshll.u32 %s449, 4
          %451 = dma.done %s448, %s450
        $region130: #{tpu_custom_call.1} parent=23 // pred_fallthru
          _
        %v452 = vld [vmem:[#allocation3] sm:$0xff]
        %v453 = vld [vmem:[#allocation3 + $0x8] sm:$0xff]
        %v454 = vld [vmem:[#allocation3 + $0x10] sm:$0xff]
        %v455 = vld [vmem:[#allocation3 + $0x18] sm:$0xff]
        %v456 = vld [vmem:[#allocation3 + $0x20] sm:$0xff]
        %v457 = vld [vmem:[#allocation3 + $0x28] sm:$0xff]
        %v458 = vld [vmem:[#allocation3 + $0x30] sm:$0xff]
        %v459 = vld [vmem:[#allocation3 + $0x38] sm:$0xff]
        %v460 = vld [vmem:[#allocation3 + $0x40] sm:$0xff]
        %v461 = vld [vmem:[#allocation3 + $0x48] sm:$0xff]
        %v462 = vld [vmem:[#allocation3 + $0x50] sm:$0xff]
        %v463 = vld [vmem:[#allocation3 + $0x58] sm:$0xff]
        %v464 = vld [vmem:[#allocation3 + $0x60] sm:$0xff]
        %v465 = vld [vmem:[#allocation3 + $0x68] sm:$0xff]
        %v466 = vld [vmem:[#allocation3 + $0x70] sm:$0xff]
        %v467 = vld [vmem:[#allocation3 + $0x78] sm:$0xff]
        %v468 = vld [vmem:[#allocation6] sm:$0xff]
        %v469 = vld [vmem:[#allocation7] sm:$0xff]
        %v470 = vld [vmem:[%s136] sm:$0xff]
        %471 = vmatprep.subr.mxu0 0.0
        %472 = vmatpush1.msra.mxu0 %v452
        %473 = vmatprep.subr.mxu0 0.0
        %474 = vmatpush1.msra.mxu0 %v453
        %475 = vmatprep.subr.mxu0 0.0
        %476 = vmatpush1.msra.mxu0 %v454
        %477 = vmatprep.subr.mxu0 0.0
        %478 = vmatpush1.msra.mxu0 %v455
        %479 = vmatprep.subr.mxu0 0.0
        %480 = vmatpush1.msra.mxu0 %v456
        %481 = vmatprep.subr.mxu0 0.0
        %482 = vmatpush1.msra.mxu0 %v457
        %483 = vmatprep.subr.mxu0 0.0
        %484 = vmatpush1.msra.mxu0 %v458
        %485 = vmatprep.subr.mxu0 0.0
        %486 = vmatpush1.msra.mxu0 %v459
        %487 = vmatprep.subr.mxu0 0.0
        %488 = vmatpush1.msra.mxu0 %v460
        %489 = vmatprep.subr.mxu0 0.0
        %490 = vmatpush1.msra.mxu0 %v461
        %491 = vmatprep.subr.mxu0 0.0
        %492 = vmatpush1.msra.mxu0 %v462
        %493 = vmatprep.subr.mxu0 0.0
        %494 = vmatpush1.msra.mxu0 %v463
        %495 = vmatprep.subr.mxu0 0.0
        %496 = vmatpush1.msra.mxu0 %v464
        %497 = vmatprep.subr.mxu0 0.0
        %498 = vmatpush1.msra.mxu0 %v465
        %499 = vmatprep.subr.mxu0 0.0
        %500 = vmatpush1.msra.mxu0 %v466
        %501 = vmatprep.subr.mxu0 0.0
        %502 = vmatpush1.msra.mxu0 %v467
        %503 = vmatprep.subr.mxu0 0.0
        %504 = vmatpush1.msra.mxu0 0.0
        %505 = vmatprep.subr.mxu0 0.0
        %506 = vmatpush1.msra.mxu0 0.0
        %507 = vmatprep.subr.mxu0 0.0
        %508 = vmatpush1.msra.mxu0 0.0
        %509 = vmatprep.subr.mxu0 0.0
        %510 = vmatpush1.msra.mxu0 0.0
        %511 = vmatprep.subr.mxu0 0.0
        %512 = vmatpush1.msra.mxu0 0.0
        %513 = vmatprep.subr.mxu0 0.0
        %514 = vmatpush1.msra.mxu0 0.0
        %515 = vmatprep.subr.mxu0 0.0
        %516 = vmatpush1.msra.mxu0 0.0
        %517 = vmatprep.subr.mxu0 0.0
        %518 = vmatpush1.msra.mxu0 0.0
        %519 = vmatprep.subr.mxu0 0.0
        %520 = vmatpush1.msra.mxu0 0.0
        %521 = vmatprep.subr.mxu0 0.0
        %522 = vmatpush1.msra.mxu0 0.0
        %523 = vmatprep.subr.mxu0 0.0
        %524 = vmatpush1.msra.mxu0 0.0
        %525 = vmatprep.subr.mxu0 0.0
        %526 = vmatpush1.msra.mxu0 0.0
        %527 = vmatprep.subr.mxu0 0.0
        %528 = vmatpush1.msra.mxu0 0.0
        %529 = vmatprep.subr.mxu0 0.0
        %530 = vmatpush1.msra.mxu0 0.0
        %531 = vmatprep.subr.mxu0 0.0
        %532 = vmatpush1.msra.mxu0 0.0
        %533 = vmatprep.subr.mxu0 0.0
        %534 = vmatpush1.msra.mxu0 0.0
        %535 = vmatprep.mubr.f32.mxu0 0.0
        %536 = vmatmul.mubr.f32.gmra.mrb[0].mxu0 %v468
        %v537 = vpop.f32.mrb[0].mxu0
        %v538 = vadd.f32 0.0, %v537
        %v539 = vpop.f32.mrb[0].mxu0
        %540 = vdwg.mxu0
        %v541 = vadd.f32 %v470, %v538
        %v542 = vsub.f32 %v541, %v469
        %v543 = vmax.f32 %v542, 0.0
        %v544 = vmul.f32 %v543, 0.2
        %v545 = vadd.f32 %v469, %v544
        %v546 = vmul.f32 %v545, 0.9
        %547 = vst [vmem:[%s136] sm:$0xff] %v543
        %s548 = scalar_lea.vmem %s136, 8 [#allocation8]
        %v549 = vld [vmem:[%s548] sm:$0xff]
        %550 = vmatprep.subr.mxu0 0.0
        %551 = vmatpush1.msra.mxu0 %v452
        %552 = vmatprep.subr.mxu0 0.0
        %553 = vmatpush1.msra.mxu0 %v453
        %554 = vmatprep.subr.mxu0 0.0
        %555 = vmatpush1.msra.mxu0 %v454
        %556 = vmatprep.subr.mxu0 0.0
        %557 = vmatpush1.msra.mxu0 %v455
        %558 = vmatprep.subr.mxu0 0.0
        %559 = vmatpush1.msra.mxu0 %v456
        %560 = vmatprep.subr.mxu0 0.0
        %561 = vmatpush1.msra.mxu0 %v457
        %562 = vmatprep.subr.mxu0 0.0
        %563 = vmatpush1.msra.mxu0 %v458
        %564 = vmatprep.subr.mxu0 0.0
        %565 = vmatpush1.msra.mxu0 %v459
        %566 = vmatprep.subr.mxu0 0.0
        %567 = vmatpush1.msra.mxu0 %v460
        %568 = vmatprep.subr.mxu0 0.0
        %569 = vmatpush1.msra.mxu0 %v461
        %570 = vmatprep.subr.mxu0 0.0
        %571 = vmatpush1.msra.mxu0 %v462
        %572 = vmatprep.subr.mxu0 0.0
        %573 = vmatpush1.msra.mxu0 %v463
        %574 = vmatprep.subr.mxu0 0.0
        %575 = vmatpush1.msra.mxu0 %v464
        %576 = vmatprep.subr.mxu0 0.0
        %577 = vmatpush1.msra.mxu0 %v465
        %578 = vmatprep.subr.mxu0 0.0
        %579 = vmatpush1.msra.mxu0 %v466
        %580 = vmatprep.subr.mxu0 0.0
        %581 = vmatpush1.msra.mxu0 %v467
        %582 = vmatprep.subr.mxu0 0.0
        %583 = vmatpush1.msra.mxu0 0.0
        %584 = vmatprep.subr.mxu0 0.0
        %585 = vmatpush1.msra.mxu0 0.0
        %586 = vmatprep.subr.mxu0 0.0
        %587 = vmatpush1.msra.mxu0 0.0
        %588 = vmatprep.subr.mxu0 0.0
        %589 = vmatpush1.msra.mxu0 0.0
        %590 = vmatprep.subr.mxu0 0.0
        %591 = vmatpush1.msra.mxu0 0.0
        %592 = vmatprep.subr.mxu0 0.0
        %593 = vmatpush1.msra.mxu0 0.0
        %594 = vmatprep.subr.mxu0 0.0
        %595 = vmatpush1.msra.mxu0 0.0
        %596 = vmatprep.subr.mxu0 0.0
        %597 = vmatpush1.msra.mxu0 0.0
        %598 = vmatprep.subr.mxu0 0.0
        %599 = vmatpush1.msra.mxu0 0.0
        %600 = vmatprep.subr.mxu0 0.0
        %601 = vmatpush1.msra.mxu0 0.0
        %602 = vmatprep.subr.mxu0 0.0
        %603 = vmatpush1.msra.mxu0 0.0
        %604 = vmatprep.subr.mxu0 0.0
        %605 = vmatpush1.msra.mxu0 0.0
        %606 = vmatprep.subr.mxu0 0.0
        %607 = vmatpush1.msra.mxu0 0.0
        %608 = vmatprep.subr.mxu0 0.0
        %609 = vmatpush1.msra.mxu0 0.0
        %610 = vmatprep.subr.mxu0 0.0
        %611 = vmatpush1.msra.mxu0 0.0
        %612 = vmatprep.subr.mxu0 0.0
        %613 = vmatpush1.msra.mxu0 0.0
        %614 = vmatprep.mubr.f32.mxu0 0.0
        %615 = vmatmul.mubr.f32.gmra.mrb[0].mxu0 %v543
        %v616 = vpop.f32.mrb[0].mxu0
        %v617 = vadd.f32 0.0, %v616
        %v618 = vpop.f32.mrb[0].mxu0
        %619 = vdwg.mxu0
        %v620 = vadd.f32 %v549, %v617
        %v621 = vsub.f32 %v620, %v546
        %v622 = vmax.f32 %v621, 0.0
        %v623 = vmul.f32 %v622, 0.2
        %v624 = vadd.f32 %v546, %v623
        %v625 = vmul.f32 %v624, 0.9
        %626 = vst [vmem:[%s548] sm:$0xff] %v622
        %s627 = scalar_lea.vmem %s136, 16 [#allocation8]
        %v628 = vld [vmem:[%s627] sm:$0xff]
        %629 = vmatprep.subr.mxu0 0.0
        %630 = vmatpush1.msra.mxu0 %v452
        %631 = vmatprep.subr.mxu0 0.0
        %632 = vmatpush1.msra.mxu0 %v453
        %633 = vmatprep.subr.mxu0 0.0
        %634 = vmatpush1.msra.mxu0 %v454
        %635 = vmatprep.subr.mxu0 0.0
        %636 = vmatpush1.msra.mxu0 %v455
        %637 = vmatprep.subr.mxu0 0.0
        %638 = vmatpush1.msra.mxu0 %v456
        %639 = vmatprep.subr.mxu0 0.0
        %640 = vmatpush1.msra.mxu0 %v457
        %641 = vmatprep.subr.mxu0 0.0
        %642 = vmatpush1.msra.mxu0 %v458
        %643 = vmatprep.subr.mxu0 0.0
        %644 = vmatpush1.msra.mxu0 %v459
        %645 = vmatprep.subr.mxu0 0.0
        %646 = vmatpush1.msra.mxu0 %v460
        %647 = vmatprep.subr.mxu0 0.0
        %648 = vmatpush1.msra.mxu0 %v461
        %649 = vmatprep.subr.mxu0 0.0
        %650 = vmatpush1.msra.mxu0 %v462
        %651 = vmatprep.subr.mxu0 0.0
        %652 = vmatpush1.msra.mxu0 %v463
        %653 = vmatprep.subr.mxu0 0.0
        %654 = vmatpush1.msra.mxu0 %v464
        %655 = vmatprep.subr.mxu0 0.0
        %656 = vmatpush1.msra.mxu0 %v465
        %657 = vmatprep.subr.mxu0 0.0
        %658 = vmatpush1.msra.mxu0 %v466
        %659 = vmatprep.subr.mxu0 0.0
        %660 = vmatpush1.msra.mxu0 %v467
        %661 = vmatprep.subr.mxu0 0.0
        %662 = vmatpush1.msra.mxu0 0.0
        %663 = vmatprep.subr.mxu0 0.0
        %664 = vmatpush1.msra.mxu0 0.0
        %665 = vmatprep.subr.mxu0 0.0
        %666 = vmatpush1.msra.mxu0 0.0
        %667 = vmatprep.subr.mxu0 0.0
        %668 = vmatpush1.msra.mxu0 0.0
        %669 = vmatprep.subr.mxu0 0.0
        %670 = vmatpush1.msra.mxu0 0.0
        %671 = vmatprep.subr.mxu0 0.0
        %672 = vmatpush1.msra.mxu0 0.0
        %673 = vmatprep.subr.mxu0 0.0
        %674 = vmatpush1.msra.mxu0 0.0
        %675 = vmatprep.subr.mxu0 0.0
        %676 = vmatpush1.msra.mxu0 0.0
        %677 = vmatprep.subr.mxu0 0.0
        %678 = vmatpush1.msra.mxu0 0.0
        %679 = vmatprep.subr.mxu0 0.0
        %680 = vmatpush1.msra.mxu0 0.0
        %681 = vmatprep.subr.mxu0 0.0
        %682 = vmatpush1.msra.mxu0 0.0
        %683 = vmatprep.subr.mxu0 0.0
        %684 = vmatpush1.msra.mxu0 0.0
        %685 = vmatprep.subr.mxu0 0.0
        %686 = vmatpush1.msra.mxu0 0.0
        %687 = vmatprep.subr.mxu0 0.0
        %688 = vmatpush1.msra.mxu0 0.0
        %689 = vmatprep.subr.mxu0 0.0
        %690 = vmatpush1.msra.mxu0 0.0
        %691 = vmatprep.subr.mxu0 0.0
        %692 = vmatpush1.msra.mxu0 0.0
        %693 = vmatprep.mubr.f32.mxu0 0.0
        %694 = vmatmul.mubr.f32.gmra.mrb[0].mxu0 %v622
        %v695 = vpop.f32.mrb[0].mxu0
        %v696 = vadd.f32 0.0, %v695
        %v697 = vpop.f32.mrb[0].mxu0
        %698 = vdwg.mxu0
        %v699 = vadd.f32 %v628, %v696
        %v700 = vsub.f32 %v699, %v625
        %v701 = vmax.f32 %v700, 0.0
        %v702 = vmul.f32 %v701, 0.2
        %v703 = vadd.f32 %v625, %v702
        %v704 = vmul.f32 %v703, 0.9
        %705 = vst [vmem:[%s627] sm:$0xff] %v701
        %s706 = scalar_lea.vmem %s136, 24 [#allocation8]
        %v707 = vld [vmem:[%s706] sm:$0xff]
        %708 = vmatprep.subr.mxu0 0.0
        %709 = vmatpush1.msra.mxu0 %v452
        %710 = vmatprep.subr.mxu0 0.0
        %711 = vmatpush1.msra.mxu0 %v453
        %712 = vmatprep.subr.mxu0 0.0
        %713 = vmatpush1.msra.mxu0 %v454
        %714 = vmatprep.subr.mxu0 0.0
        %715 = vmatpush1.msra.mxu0 %v455
        %716 = vmatprep.subr.mxu0 0.0
        %717 = vmatpush1.msra.mxu0 %v456
        %718 = vmatprep.subr.mxu0 0.0
        %719 = vmatpush1.msra.mxu0 %v457
        %720 = vmatprep.subr.mxu0 0.0
        %721 = vmatpush1.msra.mxu0 %v458
        %722 = vmatprep.subr.mxu0 0.0
        %723 = vmatpush1.msra.mxu0 %v459
        %724 = vmatprep.subr.mxu0 0.0
        %725 = vmatpush1.msra.mxu0 %v460
        %726 = vmatprep.subr.mxu0 0.0
        %727 = vmatpush1.msra.mxu0 %v461
        %728 = vmatprep.subr.mxu0 0.0
        %729 = vmatpush1.msra.mxu0 %v462
        %730 = vmatprep.subr.mxu0 0.0
        %731 = vmatpush1.msra.mxu0 %v463
        %732 = vmatprep.subr.mxu0 0.0
        %733 = vmatpush1.msra.mxu0 %v464
        %734 = vmatprep.subr.mxu0 0.0
        %735 = vmatpush1.msra.mxu0 %v465
        %736 = vmatprep.subr.mxu0 0.0
        %737 = vmatpush1.msra.mxu0 %v466
        %738 = vmatprep.subr.mxu0 0.0
        %739 = vmatpush1.msra.mxu0 %v467
        %740 = vmatprep.subr.mxu0 0.0
        %741 = vmatpush1.msra.mxu0 0.0
        %742 = vmatprep.subr.mxu0 0.0
        %743 = vmatpush1.msra.mxu0 0.0
        %744 = vmatprep.subr.mxu0 0.0
        %745 = vmatpush1.msra.mxu0 0.0
        %746 = vmatprep.subr.mxu0 0.0
        %747 = vmatpush1.msra.mxu0 0.0
        %748 = vmatprep.subr.mxu0 0.0
        %749 = vmatpush1.msra.mxu0 0.0
        %750 = vmatprep.subr.mxu0 0.0
        %751 = vmatpush1.msra.mxu0 0.0
        %752 = vmatprep.subr.mxu0 0.0
        %753 = vmatpush1.msra.mxu0 0.0
        %754 = vmatprep.subr.mxu0 0.0
        %755 = vmatpush1.msra.mxu0 0.0
        %756 = vmatprep.subr.mxu0 0.0
        %757 = vmatpush1.msra.mxu0 0.0
        %758 = vmatprep.subr.mxu0 0.0
        %759 = vmatpush1.msra.mxu0 0.0
        %760 = vmatprep.subr.mxu0 0.0
        %761 = vmatpush1.msra.mxu0 0.0
        %762 = vmatprep.subr.mxu0 0.0
        %763 = vmatpush1.msra.mxu0 0.0
        %764 = vmatprep.subr.mxu0 0.0
        %765 = vmatpush1.msra.mxu0 0.0
        %766 = vmatprep.subr.mxu0 0.0
        %767 = vmatpush1.msra.mxu0 0.0
        %768 = vmatprep.subr.mxu0 0.0
        %769 = vmatpush1.msra.mxu0 0.0
        %770 = vmatprep.subr.mxu0 0.0
        %771 = vmatpush1.msra.mxu0 0.0
        %772 = vmatprep.mubr.f32.mxu0 0.0
        %773 = vmatmul.mubr.f32.gmra.mrb[0].mxu0 %v701
        %v774 = vpop.f32.mrb[0].mxu0
        %v775 = vadd.f32 0.0, %v774
        %v776 = vpop.f32.mrb[0].mxu0
        %777 = vdwg.mxu0
        %v778 = vadd.f32 %v707, %v775
        %v779 = vsub.f32 %v778, %v704
        %v780 = vmax.f32 %v779, 0.0
        %v781 = vmul.f32 %v780, 0.2
        %v782 = vadd.f32 %v704, %v781
        %v783 = vmul.f32 %v782, 0.9
        %784 = vst [vmem:[%s706] sm:$0xff] %v780
        %s785 = scalar_lea.vmem %s136, 32 [#allocation8]
        %v786 = vld [vmem:[%s785] sm:$0xff]
        %787 = vmatprep.subr.mxu0 0.0
        %788 = vmatpush1.msra.mxu0 %v452
        %789 = vmatprep.subr.mxu0 0.0
        %790 = vmatpush1.msra.mxu0 %v453
        %791 = vmatprep.subr.mxu0 0.0
        %792 = vmatpush1.msra.mxu0 %v454
        %793 = vmatprep.subr.mxu0 0.0
        %794 = vmatpush1.msra.mxu0 %v455
        %795 = vmatprep.subr.mxu0 0.0
        %796 = vmatpush1.msra.mxu0 %v456
        %797 = vmatprep.subr.mxu0 0.0
        %798 = vmatpush1.msra.mxu0 %v457
        %799 = vmatprep.subr.mxu0 0.0
        %800 = vmatpush1.msra.mxu0 %v458
        %801 = vmatprep.subr.mxu0 0.0
        %802 = vmatpush1.msra.mxu0 %v459
        %803 = vmatprep.subr.mxu0 0.0
        %804 = vmatpush1.msra.mxu0 %v460
        %805 = vmatprep.subr.mxu0 0.0
        %806 = vmatpush1.msra.mxu0 %v461
        %807 = vmatprep.subr.mxu0 0.0
        %808 = vmatpush1.msra.mxu0 %v462
        %809 = vmatprep.subr.mxu0 0.0
        %810 = vmatpush1.msra.mxu0 %v463
        %811 = vmatprep.subr.mxu0 0.0
        %812 = vmatpush1.msra.mxu0 %v464
        %813 = vmatprep.subr.mxu0 0.0
        %814 = vmatpush1.msra.mxu0 %v465
        %815 = vmatprep.subr.mxu0 0.0
        %816 = vmatpush1.msra.mxu0 %v466
        %817 = vmatprep.subr.mxu0 0.0
        %818 = vmatpush1.msra.mxu0 %v467
        %819 = vmatprep.subr.mxu0 0.0
        %820 = vmatpush1.msra.mxu0 0.0
        %821 = vmatprep.subr.mxu0 0.0
        %822 = vmatpush1.msra.mxu0 0.0
        %823 = vmatprep.subr.mxu0 0.0
        %824 = vmatpush1.msra.mxu0 0.0
        %825 = vmatprep.subr.mxu0 0.0
        %826 = vmatpush1.msra.mxu0 0.0
        %827 = vmatprep.subr.mxu0 0.0
        %828 = vmatpush1.msra.mxu0 0.0
        %829 = vmatprep.subr.mxu0 0.0
        %830 = vmatpush1.msra.mxu0 0.0
        %831 = vmatprep.subr.mxu0 0.0
        %832 = vmatpush1.msra.mxu0 0.0
        %833 = vmatprep.subr.mxu0 0.0
        %834 = vmatpush1.msra.mxu0 0.0
        %835 = vmatprep.subr.mxu0 0.0
        %836 = vmatpush1.msra.mxu0 0.0
        %837 = vmatprep.subr.mxu0 0.0
        %838 = vmatpush1.msra.mxu0 0.0
        %839 = vmatprep.subr.mxu0 0.0
        %840 = vmatpush1.msra.mxu0 0.0
        %841 = vmatprep.subr.mxu0 0.0
        %842 = vmatpush1.msra.mxu0 0.0
        %843 = vmatprep.subr.mxu0 0.0
        %844 = vmatpush1.msra.mxu0 0.0
        %845 = vmatprep.subr.mxu0 0.0
        %846 = vmatpush1.msra.mxu0 0.0
        %847 = vmatprep.subr.mxu0 0.0
        %848 = vmatpush1.msra.mxu0 0.0
        %849 = vmatprep.subr.mxu0 0.0
        %850 = vmatpush1.msra.mxu0 0.0
        %851 = vmatprep.mubr.f32.mxu0 0.0
        %852 = vmatmul.mubr.f32.gmra.mrb[0].mxu0 %v780
        %v853 = vpop.f32.mrb[0].mxu0
        %v854 = vadd.f32 0.0, %v853
        %v855 = vpop.f32.mrb[0].mxu0
        %856 = vdwg.mxu0
        %v857 = vadd.f32 %v786, %v854
        %v858 = vsub.f32 %v857, %v783
        %v859 = vmax.f32 %v858, 0.0
        %v860 = vmul.f32 %v859, 0.2
        %v861 = vadd.f32 %v783, %v860
        %v862 = vmul.f32 %v861, 0.9
        %863 = vst [vmem:[%s785] sm:$0xff] %v859
        %864 = vst [vmem:[#allocation6] sm:$0xff] %v859
        %865 = vst [vmem:[#allocation7] sm:$0xff] %v862
        %s866 = sand.u32 %s68, 1
        %s867 = scalar_lea.sflag [#allocation9], %s866
        %s868 = sand.u32 %s68, 1
        %s869 = smul.addr %s868, 40
        %s870 = scalar_lea.vmem [#allocation8], %s869
        // Predicated region
        $region131: #{tpu_custom_call.1} parent=23 // pred_check
          %p871 = pneg %p78
        $region132: #{tpu_custom_call.1} parent=23 // pred_check_branch
          %873 = sbr.rel (%p871) target = $region134
        $region133: #{tpu_custom_call.1} parent=23 // pred_region
          %s875 = ssub.s32 640, 640
          %876 = vsyncadd %s867, %s875
          %s877 = smul.addr %s23, 5
          %s878 = smul.addr %s22, 20
          %s879 = sadd.s32 %s877, %s878
          %s880 = smul.addr %s879, 128
          %s881 = scalar_lea.hbm %s4, %s880
          %s882 = sshll.u32 %s870, 4
          %s883 = int_to_ptr.vmem [resolvable:$true] %s882
          %888 = dma.vmem_to_hbm [thread:$0]  %s883, 640, %s881, %s867, 128, 128, 8
        $region134: #{tpu_custom_call.1} parent=23 // pred_fallthru
          _
      $region24: #{tpu_custom_call.1} parent=5 // pred_fallthru
        _
      %p889 = scmp.le.s32.totalorder 2, %s13
      // Predicated region
      $region135: #{tpu_custom_call.1} parent=5 // pred_check
        %p890 = pneg %p889
      $region136: #{tpu_custom_call.1} parent=5 // pred_check_branch
        %892 = sbr.rel (%p890) target = $region138
      $region137: #{tpu_custom_call.1} parent=5 // pred_region
        %s893 = ssub.s32 %s13, 2
        // Predicated region
        $region139: #{tpu_custom_call.1} parent=137 // pred_check
          %p894 = pneg %p84
        $region140: #{tpu_custom_call.1} parent=137 // pred_check_branch
          %896 = sbr.rel (%p894) target = $region142
        $region141: #{tpu_custom_call.1} parent=137 // pred_region
          %s897 = sand.u32 %s69, 1
          %s898 = scalar_lea.sflag [#allocation9], %s897
          %s899 = sand.u32 %s69, 1
          %s900 = smul.addr %s899, 40
          %s901 = scalar_lea.vmem [#allocation8], %s900
          %902 = dma.done %s898, 640
        $region142: #{tpu_custom_call.1} parent=137 // pred_fallthru
          _
      $region138: #{tpu_custom_call.1} parent=5 // pred_fallthru
        _
    $region6: #{tpu_custom_call.1} parent=1 // loop_footer
      %s17 = sadd.s32 1, %s13
    $region7: #{tpu_custom_call.1} parent=1 // loop_footer_branch
      %12 = sbr.rel target = $region3
    $region8: #{tpu_custom_call.1} parent=1 // loop_exit
      _
    %903 = vsyncpa [#allocation9], 1
    %s904 = scalar_lea.sflag [#allocation9], 1
    %905 = vsyncpa %s904, 1
  %906 = vsyncmov [#allocation5]
  %s907 = vpop.sfrf %906
  %p908 = scmp.eq.s32.totalorder %s907, 0
  %p909 = pneg %p908
  %911 = shalt.err (%p909)
  %s912 = scalar_lea.sflag [#allocation5], 1
  %913 = vsyncmov %s912
  %s914 = vpop.sfrf %913
  %p915 = scmp.eq.s32.totalorder %s914, 0
  %p916 = pneg %p915
  %918 = shalt.err (%p916)
  %s919 = scalar_lea.sflag [#allocation5], 2
  %920 = vsyncmov %s919
  %s921 = vpop.sfrf %920
  %p922 = scmp.eq.s32.totalorder %s921, 0
  %p923 = pneg %p922
  %925 = shalt.err (%p923)

</llo_original>
